<compile_context>
chip_gen: v5e
topology: v5e:2x2
jax: 0.10.0
libtpu: 0.0.40
codegen_flags: <defaults>
</compile_context>

<pallas_src>
import functools

import jax
import jax.numpy as jnp
import numpy as np
from jax import lax
from jax.experimental import pallas as pl
from jax.experimental.pallas import tpu as pltpu


# ----------------------------------------------------------------------------
# Pallas kernel: in-kernel gather + fused bidirectional LSTM recurrence.
# ----------------------------------------------------------------------------
def bilstm_kernel(ids_ref, embf_ref, embb_ref, whhf_ref, whhb_ref, out_ref,
                  ginf_ref, ginb_ref, *, T, B, H):
    """CharBiLSTM forward.

    ids_ref  : (B, T)  int32, SMEM   character ids
    embf_ref : (A, 4H) f32,  VMEM    emb @ W_ih_fwd + b_fwd   (gate cols i,f,g,o)
    embb_ref : (A, 4H) f32,  VMEM    emb @ W_ih_bwd + b_bwd
    whhf_ref : (H, 4H) f32,  VMEM    recurrent weights, forward
    whhb_ref : (H, 4H) f32,  VMEM    recurrent weights, backward
    out_ref  : (B, 2H) f32,  VMEM    [h_fwd at t=T-1 | h_bwd at t=0]
    ginf_ref / ginb_ref : (T, B, 4H) f32 VMEM scratch, gathered gate inputs
    """
    # ---- in-kernel gather, direction time-reversal folded into the index ---
    # char ids are SMEM scalars; each copy is a whole lane-dense (4H = 128)
    # row of the projected embedding table.
    for t in range(T):
        for b in range(B):
            idf = ids_ref[b, t]            # forward consumes time t
            idb = ids_ref[b, T - 1 - t]    # backward consumes time T-1-t
            ginf_ref[t, b:b + 1, :] = embf_ref[pl.ds(idf, 1), :]
            ginb_ref[t, b:b + 1, :] = embb_ref[pl.ds(idb, 1), :]

    # Small weights (H=32): safe to hoist into vregs here.
    whh_f = whhf_ref[...]
    whh_b = whhb_ref[...]

    h_f = jnp.zeros((B, H), jnp.float32)
    c_f = jnp.zeros((B, H), jnp.float32)
    h_b = jnp.zeros((B, H), jnp.float32)
    c_b = jnp.zeros((B, H), jnp.float32)

    # ---- statically unrolled recurrence (T small & static) -----------------
    # Per step and direction: one first-axis-aligned scratch load, one
    # (B,H)@(H,4H) MXU matmul, one full-width sigmoid, one tanh on the g
    # block, and the c/h elementwise updates.  Biases are already folded into
    # the gathered gate inputs.
    for t in range(T):
        gf = ginf_ref[t] + jnp.dot(h_f, whh_f, preferred_element_type=jnp.float32)
        gb = ginb_ref[t] + jnp.dot(h_b, whh_b, preferred_element_type=jnp.float32)

        sf = jax.nn.sigmoid(gf)            # i, f, (g unused), o
        sb = jax.nn.sigmoid(gb)

        c_f = sf[:, H:2 * H] * c_f + sf[:, 0:H] * jnp.tanh(gf[:, 2 * H:3 * H])
        c_b = sb[:, H:2 * H] * c_b + sb[:, 0:H] * jnp.tanh(gb[:, 2 * H:3 * H])
        h_f = sf[:, 3 * H:4 * H] * jnp.tanh(c_f)
        h_b = sb[:, 3 * H:4 * H] * jnp.tanh(c_b)

    # h_f = forward hidden at t=T-1, h_b = backward hidden at t=0
    # (exactly the PyTorch concat output).
    out_ref[:, 0:H] = h_f
    out_ref[:, H:2 * H] = h_b


# ----------------------------------------------------------------------------
# Wrapper: trace-time projection fold + pallas_call.
# ----------------------------------------------------------------------------
@functools.partial(jax.jit, static_argnames=("hidden_dim",))
def char_bilstm_forward(char_ids, emb_weight, params, hidden_dim):
    B, T = char_ids.shape
    H = hidden_dim

    # Fold input projection + biases into the embedding table (valid because
    # dropout is identity in eval mode).  Tiny (A, 4H) tables, built once.
    hp = lax.Precision.HIGHEST
    emb_proj_f = jnp.dot(emb_weight, params["wih_f"], precision=hp) + params["b_f"]
    emb_proj_b = jnp.dot(emb_weight, params["wih_b"], precision=hp) + params["b_b"]

    kernel = functools.partial(bilstm_kernel, T=T, B=B, H=H)

    return pl.pallas_call(
        kernel,
        out_shape=jax.ShapeDtypeStruct((B, 2 * H), jnp.float32),
        in_specs=[
            pl.BlockSpec(memory_space=pltpu.MemorySpace.SMEM),   # char_ids
            pl.BlockSpec(memory_space=pltpu.MemorySpace.VMEM),   # emb_proj_f
            pl.BlockSpec(memory_space=pltpu.MemorySpace.VMEM),   # emb_proj_b
            pl.BlockSpec(memory_space=pltpu.MemorySpace.VMEM),   # whh_f
            pl.BlockSpec(memory_space=pltpu.MemorySpace.VMEM),   # whh_b
        ],
        out_specs=pl.BlockSpec(memory_space=pltpu.MemorySpace.VMEM),
        scratch_shapes=[
            pltpu.VMEM((T, B, 4 * H), jnp.float32),   # gathered fwd gate inputs
            pltpu.VMEM((T, B, 4 * H), jnp.float32),   # gathered bwd gate inputs
        ],
    )(char_ids, emb_proj_f, emb_proj_b, params["whh_f"], params["whh_b"])


# ----------------------------------------------------------------------------
# Pure-JAX reference (correctness check).
# ----------------------------------------------------------------------------
def bilstm_ref(char_ids, emb_weight, params, H):
    x = emb_weight[char_ids]                 # (B, T, E)

    def run_dir(xseq, wih, whh, b):
        B = xseq.shape[0]

        def step(carry, xt):
            h, c = carry
            gates = xt @ wih + h @ whh + b[0]
            i = jax.nn.sigmoid(gates[:, 0 * H:1 * H])
            f = jax.nn.sigmoid(gates[:, 1 * H:2 * H])
            g = jnp.tanh(gates[:, 2 * H:3 * H])
            o = jax.nn.sigmoid(gates[:, 3 * H:4 * H])
            c_new = f * c + i * g
            h_new = o * jnp.tanh(c_new)
            return (h_new, c_new), h_new

        init = (jnp.zeros((B, H), jnp.float32), jnp.zeros((B, H), jnp.float32))
        (h_fin, _), _ = lax.scan(step, init, jnp.transpose(xseq, (1, 0, 2)))
        return h_fin

    h_f = run_dir(x, params["wih_f"], params["whh_f"], params["b_f"])
    h_b = run_dir(x[:, ::-1, :], params["wih_b"], params["whh_b"], params["b_b"])
    return jnp.concatenate([h_f, h_b], axis=-1)


# ----------------------------------------------------------------------------
# Deterministic parameter construction (mirrors the PyTorch __init__ shapes).
# ----------------------------------------------------------------------------
def make_params(key, alphabet_size, embedding_dim, hidden_dim):
    E, H = embedding_dim, hidden_dim
    ks = jax.random.split(key, 9)

    # Embedding: uniform(-sqrt(3/E), sqrt(3/E)), row 0 zeroed (pad).
    scale = np.sqrt(3.0 / E).astype(np.float32)
    emb = jax.random.uniform(ks[0], (alphabet_size, E), jnp.float32, -scale, scale)
    emb = emb.at[0, :].set(0.0)

    # LSTM weights: PyTorch default uniform(-1/sqrt(H), 1/sqrt(H)).
    k = 1.0 / np.sqrt(H)

    def u(kk, shape):
        return jax.random.uniform(kk, shape, jnp.float32, -k, k)

    params = {
        # stored pre-transposed: (E, 4H) and (H, 4H); bias = b_ih + b_hh as (1, 4H)
        "wih_f": u(ks[1], (4 * H, E)).T,
        "whh_f": u(ks[2], (4 * H, H)).T,
        "b_f":   (u(ks[3], (4 * H,)) + u(ks[4], (4 * H,)))[None, :],
        "wih_b": u(ks[5], (4 * H, E)).T,
        "whh_b": u(ks[6], (4 * H, H)).T,
        "b_b":   (u(ks[7], (4 * H,)) + u(ks[8], (4 * H,)))[None, :],
    }
    return emb, params


if __name__ == "__main__":
    ALPHABET_SIZE = 20
    EMBEDDING_DIM = 16
    HIDDEN_DIM = 32
    BATCH = 2
    SEQ = 8

    key = jax.random.PRNGKey(0)
    k_param, k_ids = jax.random.split(key)

    emb_weight, params = make_params(k_param, ALPHABET_SIZE, EMBEDDING_DIM, HIDDEN_DIM)
    char_ids = jax.random.randint(k_ids, (BATCH, SEQ), 0, ALPHABET_SIZE, dtype=jnp.int32)

    out = char_bilstm_forward(char_ids, emb_weight, params, HIDDEN_DIM)
    out = jax.block_until_ready(out)

    ref = jax.block_until_ready(bilstm_ref(char_ids, emb_weight, params, HIDDEN_DIM))

    assert out.shape == (BATCH, 2 * HIDDEN_DIM), out.shape
    np.testing.assert_allclose(np.asarray(out), np.asarray(ref), rtol=1e-4, atol=1e-5)

    print("KERNEL_OK")
</pallas_src>

<mosaic_0001>
module attributes {stable_mosaic.version = 11 : i64} {
  func.func @bilstm_kernel(%arg0: memref<2x8xi32, #tpu.memory_space<smem>>, %arg1: memref<20x128xf32, #tpu.memory_space<vmem>>, %arg2: memref<20x128xf32, #tpu.memory_space<vmem>>, %arg3: memref<32x128xf32, #tpu.memory_space<vmem>>, %arg4: memref<32x128xf32, #tpu.memory_space<vmem>>, %arg5: memref<2x64xf32, #tpu.memory_space<vmem>>, %arg6: memref<8x2x128xf32, #tpu.memory_space<vmem>>, %arg7: memref<8x2x128xf32, #tpu.memory_space<vmem>>) attributes {dimension_semantics = [], scalar_prefetch = 0 : i64, scratch_operands = 2 : i64, tpu.core_type = #tpu.core_type<tc>} {
    %c0 = arith.constant 0 : index
    %c0_0 = arith.constant 0 : index
    %0 = memref.load %arg0[%c0, %c0_0] : memref<2x8xi32, #tpu.memory_space<smem>>
    %c0_1 = arith.constant 0 : index
    %c7 = arith.constant 7 : index
    %1 = memref.load %arg0[%c0_1, %c7] : memref<2x8xi32, #tpu.memory_space<smem>>
    %2 = arith.index_cast %0 : i32 to index
    %c0_2 = arith.constant 0 : index
    %3 = vector.load %arg1[%2, %c0_2] : memref<20x128xf32, #tpu.memory_space<vmem>>, vector<1x128xf32>
    %c0_3 = arith.constant 0 : index
    %c0_4 = arith.constant 0 : index
    %c0_5 = arith.constant 0 : index
    %4 = vector.load %arg6[%c0_3, %c0_4, %c0_5] : memref<8x2x128xf32, #tpu.memory_space<vmem>>, vector<1x1x128xf32>
    %5 = vector.shape_cast %4 : vector<1x1x128xf32> to vector<1x128xf32>
    %6 = vector.shape_cast %3 : vector<1x128xf32> to vector<1x1x128xf32>
    tpu.vector_store %arg6[%c0_3, %c0_4, %c0_5], %6 {strides = array<i32>} : memref<8x2x128xf32, #tpu.memory_space<vmem>>, vector<1x1x128xf32>,
    %7 = arith.index_cast %1 : i32 to index
    %c0_6 = arith.constant 0 : index
    %8 = vector.load %arg2[%7, %c0_6] : memref<20x128xf32, #tpu.memory_space<vmem>>, vector<1x128xf32>
    %c0_7 = arith.constant 0 : index
    %c0_8 = arith.constant 0 : index
    %c0_9 = arith.constant 0 : index
    %9 = vector.load %arg7[%c0_7, %c0_8, %c0_9] : memref<8x2x128xf32, #tpu.memory_space<vmem>>, vector<1x1x128xf32>
    %10 = vector.shape_cast %9 : vector<1x1x128xf32> to vector<1x128xf32>
    %11 = vector.shape_cast %8 : vector<1x128xf32> to vector<1x1x128xf32>
    tpu.vector_store %arg7[%c0_7, %c0_8, %c0_9], %11 {strides = array<i32>} : memref<8x2x128xf32, #tpu.memory_space<vmem>>, vector<1x1x128xf32>,
    %c1 = arith.constant 1 : index
    %c0_10 = arith.constant 0 : index
    %12 = memref.load %arg0[%c1, %c0_10] : memref<2x8xi32, #tpu.memory_space<smem>>
    %c1_11 = arith.constant 1 : index
    %c7_12 = arith.constant 7 : index
    %13 = memref.load %arg0[%c1_11, %c7_12] : memref<2x8xi32, #tpu.memory_space<smem>>
    %14 = arith.index_cast %12 : i32 to index
    %c0_13 = arith.constant 0 : index
    %15 = vector.load %arg1[%14, %c0_13] : memref<20x128xf32, #tpu.memory_space<vmem>>, vector<1x128xf32>
    %c0_14 = arith.constant 0 : index
    %c1_15 = arith.constant 1 : index
    %c0_16 = arith.constant 0 : index
    %16 = vector.load %arg6[%c0_14, %c1_15, %c0_16] : memref<8x2x128xf32, #tpu.memory_space<vmem>>, vector<1x1x128xf32>
    %17 = vector.shape_cast %16 : vector<1x1x128xf32> to vector<1x128xf32>
    %18 = vector.shape_cast %15 : vector<1x128xf32> to vector<1x1x128xf32>
    tpu.vector_store %arg6[%c0_14, %c1_15, %c0_16], %18 {strides = array<i32>} : memref<8x2x128xf32, #tpu.memory_space<vmem>>, vector<1x1x128xf32>,
    %19 = arith.index_cast %13 : i32 to index
    %c0_17 = arith.constant 0 : index
    %20 = vector.load %arg2[%19, %c0_17] : memref<20x128xf32, #tpu.memory_space<vmem>>, vector<1x128xf32>
    %c0_18 = arith.constant 0 : index
    %c1_19 = arith.constant 1 : index
    %c0_20 = arith.constant 0 : index
    %21 = vector.load %arg7[%c0_18, %c1_19, %c0_20] : memref<8x2x128xf32, #tpu.memory_space<vmem>>, vector<1x1x128xf32>
    %22 = vector.shape_cast %21 : vector<1x1x128xf32> to vector<1x128xf32>
    %23 = vector.shape_cast %20 : vector<1x128xf32> to vector<1x1x128xf32>
    tpu.vector_store %arg7[%c0_18, %c1_19, %c0_20], %23 {strides = array<i32>} : memref<8x2x128xf32, #tpu.memory_space<vmem>>, vector<1x1x128xf32>,
    %c0_21 = arith.constant 0 : index
    %c1_22 = arith.constant 1 : index
    %24 = memref.load %arg0[%c0_21, %c1_22] : memref<2x8xi32, #tpu.memory_space<smem>>
    %c0_23 = arith.constant 0 : index
    %c6 = arith.constant 6 : index
    %25 = memref.load %arg0[%c0_23, %c6] : memref<2x8xi32, #tpu.memory_space<smem>>
    %26 = arith.index_cast %24 : i32 to index
    %c0_24 = arith.constant 0 : index
    %27 = vector.load %arg1[%26, %c0_24] : memref<20x128xf32, #tpu.memory_space<vmem>>, vector<1x128xf32>
    %c1_25 = arith.constant 1 : index
    %c0_26 = arith.constant 0 : index
    %c0_27 = arith.constant 0 : index
    %28 = vector.load %arg6[%c1_25, %c0_26, %c0_27] : memref<8x2x128xf32, #tpu.memory_space<vmem>>, vector<1x1x128xf32>
    %29 = vector.shape_cast %28 : vector<1x1x128xf32> to vector<1x128xf32>
    %30 = vector.shape_cast %27 : vector<1x128xf32> to vector<1x1x128xf32>
    tpu.vector_store %arg6[%c1_25, %c0_26, %c0_27], %30 {strides = array<i32>} : memref<8x2x128xf32, #tpu.memory_space<vmem>>, vector<1x1x128xf32>,
    %31 = arith.index_cast %25 : i32 to index
    %c0_28 = arith.constant 0 : index
    %32 = vector.load %arg2[%31, %c0_28] : memref<20x128xf32, #tpu.memory_space<vmem>>, vector<1x128xf32>
    %c1_29 = arith.constant 1 : index
    %c0_30 = arith.constant 0 : index
    %c0_31 = arith.constant 0 : index
    %33 = vector.load %arg7[%c1_29, %c0_30, %c0_31] : memref<8x2x128xf32, #tpu.memory_space<vmem>>, vector<1x1x128xf32>
    %34 = vector.shape_cast %33 : vector<1x1x128xf32> to vector<1x128xf32>
    %35 = vector.shape_cast %32 : vector<1x128xf32> to vector<1x1x128xf32>
    tpu.vector_store %arg7[%c1_29, %c0_30, %c0_31], %35 {strides = array<i32>} : memref<8x2x128xf32, #tpu.memory_space<vmem>>, vector<1x1x128xf32>,
    %c1_32 = arith.constant 1 : index
    %c1_33 = arith.constant 1 : index
    %36 = memref.load %arg0[%c1_32, %c1_33] : memref<2x8xi32, #tpu.memory_space<smem>>
    %c1_34 = arith.constant 1 : index
    %c6_35 = arith.constant 6 : index
    %37 = memref.load %arg0[%c1_34, %c6_35] : memref<2x8xi32, #tpu.memory_space<smem>>
    %38 = arith.index_cast %36 : i32 to index
    %c0_36 = arith.constant 0 : index
    %39 = vector.load %arg1[%38, %c0_36] : memref<20x128xf32, #tpu.memory_space<vmem>>, vector<1x128xf32>
    %c1_37 = arith.constant 1 : index
    %c1_38 = arith.constant 1 : index
    %c0_39 = arith.constant 0 : index
    %40 = vector.load %arg6[%c1_37, %c1_38, %c0_39] : memref<8x2x128xf32, #tpu.memory_space<vmem>>, vector<1x1x128xf32>
    %41 = vector.shape_cast %40 : vector<1x1x128xf32> to vector<1x128xf32>
    %42 = vector.shape_cast %39 : vector<1x128xf32> to vector<1x1x128xf32>
    tpu.vector_store %arg6[%c1_37, %c1_38, %c0_39], %42 {strides = array<i32>} : memref<8x2x128xf32, #tpu.memory_space<vmem>>, vector<1x1x128xf32>,
    %43 = arith.index_cast %37 : i32 to index
    %c0_40 = arith.constant 0 : index
    %44 = vector.load %arg2[%43, %c0_40] : memref<20x128xf32, #tpu.memory_space<vmem>>, vector<1x128xf32>
    %c1_41 = arith.constant 1 : index
    %c1_42 = arith.constant 1 : index
    %c0_43 = arith.constant 0 : index
    %45 = vector.load %arg7[%c1_41, %c1_42, %c0_43] : memref<8x2x128xf32, #tpu.memory_space<vmem>>, vector<1x1x128xf32>
    %46 = vector.shape_cast %45 : vector<1x1x128xf32> to vector<1x128xf32>
    %47 = vector.shape_cast %44 : vector<1x128xf32> to vector<1x1x128xf32>
    tpu.vector_store %arg7[%c1_41, %c1_42, %c0_43], %47 {strides = array<i32>} : memref<8x2x128xf32, #tpu.memory_space<vmem>>, vector<1x1x128xf32>,
    %c0_44 = arith.constant 0 : index
    %c2 = arith.constant 2 : index
    %48 = memref.load %arg0[%c0_44, %c2] : memref<2x8xi32, #tpu.memory_space<smem>>
    %c0_45 = arith.constant 0 : index
    %c5 = arith.constant 5 : index
    %49 = memref.load %arg0[%c0_45, %c5] : memref<2x8xi32, #tpu.memory_space<smem>>
    %50 = arith.index_cast %48 : i32 to index
    %c0_46 = arith.constant 0 : index
    %51 = vector.load %arg1[%50, %c0_46] : memref<20x128xf32, #tpu.memory_space<vmem>>, vector<1x128xf32>
    %c2_47 = arith.constant 2 : index
    %c0_48 = arith.constant 0 : index
    %c0_49 = arith.constant 0 : index
    %52 = vector.load %arg6[%c2_47, %c0_48, %c0_49] : memref<8x2x128xf32, #tpu.memory_space<vmem>>, vector<1x1x128xf32>
    %53 = vector.shape_cast %52 : vector<1x1x128xf32> to vector<1x128xf32>
    %54 = vector.shape_cast %51 : vector<1x128xf32> to vector<1x1x128xf32>
    tpu.vector_store %arg6[%c2_47, %c0_48, %c0_49], %54 {strides = array<i32>} : memref<8x2x128xf32, #tpu.memory_space<vmem>>, vector<1x1x128xf32>,
    %55 = arith.index_cast %49 : i32 to index
    %c0_50 = arith.constant 0 : index
    %56 = vector.load %arg2[%55, %c0_50] : memref<20x128xf32, #tpu.memory_space<vmem>>, vector<1x128xf32>
    %c2_51 = arith.constant 2 : index
    %c0_52 = arith.constant 0 : index
    %c0_53 = arith.constant 0 : index
    %57 = vector.load %arg7[%c2_51, %c0_52, %c0_53] : memref<8x2x128xf32, #tpu.memory_space<vmem>>, vector<1x1x128xf32>
    %58 = vector.shape_cast %57 : vector<1x1x128xf32> to vector<1x128xf32>
    %59 = vector.shape_cast %56 : vector<1x128xf32> to vector<1x1x128xf32>
    tpu.vector_store %arg7[%c2_51, %c0_52, %c0_53], %59 {strides = array<i32>} : memref<8x2x128xf32, #tpu.memory_space<vmem>>, vector<1x1x128xf32>,
    %c1_54 = arith.constant 1 : index
    %c2_55 = arith.constant 2 : index
    %60 = memref.load %arg0[%c1_54, %c2_55] : memref<2x8xi32, #tpu.memory_space<smem>>
    %c1_56 = arith.constant 1 : index
    %c5_57 = arith.constant 5 : index
    %61 = memref.load %arg0[%c1_56, %c5_57] : memref<2x8xi32, #tpu.memory_space<smem>>
    %62 = arith.index_cast %60 : i32 to index
    %c0_58 = arith.constant 0 : index
    %63 = vector.load %arg1[%62, %c0_58] : memref<20x128xf32, #tpu.memory_space<vmem>>, vector<1x128xf32>
    %c2_59 = arith.constant 2 : index
    %c1_60 = arith.constant 1 : index
    %c0_61 = arith.constant 0 : index
    %64 = vector.load %arg6[%c2_59, %c1_60, %c0_61] : memref<8x2x128xf32, #tpu.memory_space<vmem>>, vector<1x1x128xf32>
    %65 = vector.shape_cast %64 : vector<1x1x128xf32> to vector<1x128xf32>
    %66 = vector.shape_cast %63 : vector<1x128xf32> to vector<1x1x128xf32>
    tpu.vector_store %arg6[%c2_59, %c1_60, %c0_61], %66 {strides = array<i32>} : memref<8x2x128xf32, #tpu.memory_space<vmem>>, vector<1x1x128xf32>,
    %67 = arith.index_cast %61 : i32 to index
    %c0_62 = arith.constant 0 : index
    %68 = vector.load %arg2[%67, %c0_62] : memref<20x128xf32, #tpu.memory_space<vmem>>, vector<1x128xf32>
    %c2_63 = arith.constant 2 : index
    %c1_64 = arith.constant 1 : index
    %c0_65 = arith.constant 0 : index
    %69 = vector.load %arg7[%c2_63, %c1_64, %c0_65] : memref<8x2x128xf32, #tpu.memory_space<vmem>>, vector<1x1x128xf32>
    %70 = vector.shape_cast %69 : vector<1x1x128xf32> to vector<1x128xf32>
    %71 = vector.shape_cast %68 : vector<1x128xf32> to vector<1x1x128xf32>
    tpu.vector_store %arg7[%c2_63, %c1_64, %c0_65], %71 {strides = array<i32>} : memref<8x2x128xf32, #tpu.memory_space<vmem>>, vector<1x1x128xf32>,
    %c0_66 = arith.constant 0 : index
    %c3 = arith.constant 3 : index
    %72 = memref.load %arg0[%c0_66, %c3] : memref<2x8xi32, #tpu.memory_space<smem>>
    %c0_67 = arith.constant 0 : index
    %c4 = arith.constant 4 : index
    %73 = memref.load %arg0[%c0_67, %c4] : memref<2x8xi32, #tpu.memory_space<smem>>
    %74 = arith.index_cast %72 : i32 to index
    %c0_68 = arith.constant 0 : index
    %75 = vector.load %arg1[%74, %c0_68] : memref<20x128xf32, #tpu.memory_space<vmem>>, vector<1x128xf32>
    %c3_69 = arith.constant 3 : index
    %c0_70 = arith.constant 0 : index
    %c0_71 = arith.constant 0 : index
    %76 = vector.load %arg6[%c3_69, %c0_70, %c0_71] : memref<8x2x128xf32, #tpu.memory_space<vmem>>, vector<1x1x128xf32>
    %77 = vector.shape_cast %76 : vector<1x1x128xf32> to vector<1x128xf32>
    %78 = vector.shape_cast %75 : vector<1x128xf32> to vector<1x1x128xf32>
    tpu.vector_store %arg6[%c3_69, %c0_70, %c0_71], %78 {strides = array<i32>} : memref<8x2x128xf32, #tpu.memory_space<vmem>>, vector<1x1x128xf32>,
    %79 = arith.index_cast %73 : i32 to index
    %c0_72 = arith.constant 0 : index
    %80 = vector.load %arg2[%79, %c0_72] : memref<20x128xf32, #tpu.memory_space<vmem>>, vector<1x128xf32>
    %c3_73 = arith.constant 3 : index
    %c0_74 = arith.constant 0 : index
    %c0_75 = arith.constant 0 : index
    %81 = vector.load %arg7[%c3_73, %c0_74, %c0_75] : memref<8x2x128xf32, #tpu.memory_space<vmem>>, vector<1x1x128xf32>
    %82 = vector.shape_cast %81 : vector<1x1x128xf32> to vector<1x128xf32>
    %83 = vector.shape_cast %80 : vector<1x128xf32> to vector<1x1x128xf32>
    tpu.vector_store %arg7[%c3_73, %c0_74, %c0_75], %83 {strides = array<i32>} : memref<8x2x128xf32, #tpu.memory_space<vmem>>, vector<1x1x128xf32>,
    %c1_76 = arith.constant 1 : index
    %c3_77 = arith.constant 3 : index
    %84 = memref.load %arg0[%c1_76, %c3_77] : memref<2x8xi32, #tpu.memory_space<smem>>
    %c1_78 = arith.constant 1 : index
    %c4_79 = arith.constant 4 : index
    %85 = memref.load %arg0[%c1_78, %c4_79] : memref<2x8xi32, #tpu.memory_space<smem>>
    %86 = arith.index_cast %84 : i32 to index
    %c0_80 = arith.constant 0 : index
    %87 = vector.load %arg1[%86, %c0_80] : memref<20x128xf32, #tpu.memory_space<vmem>>, vector<1x128xf32>
    %c3_81 = arith.constant 3 : index
    %c1_82 = arith.constant 1 : index
    %c0_83 = arith.constant 0 : index
    %88 = vector.load %arg6[%c3_81, %c1_82, %c0_83] : memref<8x2x128xf32, #tpu.memory_space<vmem>>, vector<1x1x128xf32>
    %89 = vector.shape_cast %88 : vector<1x1x128xf32> to vector<1x128xf32>
    %90 = vector.shape_cast %87 : vector<1x128xf32> to vector<1x1x128xf32>
    tpu.vector_store %arg6[%c3_81, %c1_82, %c0_83], %90 {strides = array<i32>} : memref<8x2x128xf32, #tpu.memory_space<vmem>>, vector<1x1x128xf32>,
    %91 = arith.index_cast %85 : i32 to index
    %c0_84 = arith.constant 0 : index
    %92 = vector.load %arg2[%91, %c0_84] : memref<20x128xf32, #tpu.memory_space<vmem>>, vector<1x128xf32>
    %c3_85 = arith.constant 3 : index
    %c1_86 = arith.constant 1 : index
    %c0_87 = arith.constant 0 : index
    %93 = vector.load %arg7[%c3_85, %c1_86, %c0_87] : memref<8x2x128xf32, #tpu.memory_space<vmem>>, vector<1x1x128xf32>
    %94 = vector.shape_cast %93 : vector<1x1x128xf32> to vector<1x128xf32>
    %95 = vector.shape_cast %92 : vector<1x128xf32> to vector<1x1x128xf32>
    tpu.vector_store %arg7[%c3_85, %c1_86, %c0_87], %95 {strides = array<i32>} : memref<8x2x128xf32, #tpu.memory_space<vmem>>, vector<1x1x128xf32>,
    %c0_88 = arith.constant 0 : index
    %c4_89 = arith.constant 4 : index
    %96 = memref.load %arg0[%c0_88, %c4_89] : memref<2x8xi32, #tpu.memory_space<smem>>
    %c0_90 = arith.constant 0 : index
    %c3_91 = arith.constant 3 : index
    %97 = memref.load %arg0[%c0_90, %c3_91] : memref<2x8xi32, #tpu.memory_space<smem>>
    %98 = arith.index_cast %96 : i32 to index
    %c0_92 = arith.constant 0 : index
    %99 = vector.load %arg1[%98, %c0_92] : memref<20x128xf32, #tpu.memory_space<vmem>>, vector<1x128xf32>
    %c4_93 = arith.constant 4 : index
    %c0_94 = arith.constant 0 : index
    %c0_95 = arith.constant 0 : index
    %100 = vector.load %arg6[%c4_93, %c0_94, %c0_95] : memref<8x2x128xf32, #tpu.memory_space<vmem>>, vector<1x1x128xf32>
    %101 = vector.shape_cast %100 : vector<1x1x128xf32> to vector<1x128xf32>
    %102 = vector.shape_cast %99 : vector<1x128xf32> to vector<1x1x128xf32>
    tpu.vector_store %arg6[%c4_93, %c0_94, %c0_95], %102 {strides = array<i32>} : memref<8x2x128xf32, #tpu.memory_space<vmem>>, vector<1x1x128xf32>,
    %103 = arith.index_cast %97 : i32 to index
    %c0_96 = arith.constant 0 : index
    %104 = vector.load %arg2[%103, %c0_96] : memref<20x128xf32, #tpu.memory_space<vmem>>, vector<1x128xf32>
    %c4_97 = arith.constant 4 : index
    %c0_98 = arith.constant 0 : index
    %c0_99 = arith.constant 0 : index
    %105 = vector.load %arg7[%c4_97, %c0_98, %c0_99] : memref<8x2x128xf32, #tpu.memory_space<vmem>>, vector<1x1x128xf32>
    %106 = vector.shape_cast %105 : vector<1x1x128xf32> to vector<1x128xf32>
    %107 = vector.shape_cast %104 : vector<1x128xf32> to vector<1x1x128xf32>
    tpu.vector_store %arg7[%c4_97, %c0_98, %c0_99], %107 {strides = array<i32>} : memref<8x2x128xf32, #tpu.memory_space<vmem>>, vector<1x1x128xf32>,
    %c1_100 = arith.constant 1 : index
    %c4_101 = arith.constant 4 : index
    %108 = memref.load %arg0[%c1_100, %c4_101] : memref<2x8xi32, #tpu.memory_space<smem>>
    %c1_102 = arith.constant 1 : index
    %c3_103 = arith.constant 3 : index
    %109 = memref.load %arg0[%c1_102, %c3_103] : memref<2x8xi32, #tpu.memory_space<smem>>
    %110 = arith.index_cast %108 : i32 to index
    %c0_104 = arith.constant 0 : index
    %111 = vector.load %arg1[%110, %c0_104] : memref<20x128xf32, #tpu.memory_space<vmem>>, vector<1x128xf32>
    %c4_105 = arith.constant 4 : index
    %c1_106 = arith.constant 1 : index
    %c0_107 = arith.constant 0 : index
    %112 = vector.load %arg6[%c4_105, %c1_106, %c0_107] : memref<8x2x128xf32, #tpu.memory_space<vmem>>, vector<1x1x128xf32>
    %113 = vector.shape_cast %112 : vector<1x1x128xf32> to vector<1x128xf32>
    %114 = vector.shape_cast %111 : vector<1x128xf32> to vector<1x1x128xf32>
    tpu.vector_store %arg6[%c4_105, %c1_106, %c0_107], %114 {strides = array<i32>} : memref<8x2x128xf32, #tpu.memory_space<vmem>>, vector<1x1x128xf32>,
    %115 = arith.index_cast %109 : i32 to index
    %c0_108 = arith.constant 0 : index
    %116 = vector.load %arg2[%115, %c0_108] : memref<20x128xf32, #tpu.memory_space<vmem>>, vector<1x128xf32>
    %c4_109 = arith.constant 4 : index
    %c1_110 = arith.constant 1 : index
    %c0_111 = arith.constant 0 : index
    %117 = vector.load %arg7[%c4_109, %c1_110, %c0_111] : memref<8x2x128xf32, #tpu.memory_space<vmem>>, vector<1x1x128xf32>
    %118 = vector.shape_cast %117 : vector<1x1x128xf32> to vector<1x128xf32>
    %119 = vector.shape_cast %116 : vector<1x128xf32> to vector<1x1x128xf32>
    tpu.vector_store %arg7[%c4_109, %c1_110, %c0_111], %119 {strides = array<i32>} : memref<8x2x128xf32, #tpu.memory_space<vmem>>, vector<1x1x128xf32>,
    %c0_112 = arith.constant 0 : index
    %c5_113 = arith.constant 5 : index
    %120 = memref.load %arg0[%c0_112, %c5_113] : memref<2x8xi32, #tpu.memory_space<smem>>
    %c0_114 = arith.constant 0 : index
    %c2_115 = arith.constant 2 : index
    %121 = memref.load %arg0[%c0_114, %c2_115] : memref<2x8xi32, #tpu.memory_space<smem>>
    %122 = arith.index_cast %120 : i32 to index
    %c0_116 = arith.constant 0 : index
    %123 = vector.load %arg1[%122, %c0_116] : memref<20x128xf32, #tpu.memory_space<vmem>>, vector<1x128xf32>
    %c5_117 = arith.constant 5 : index
    %c0_118 = arith.constant 0 : index
    %c0_119 = arith.constant 0 : index
    %124 = vector.load %arg6[%c5_117, %c0_118, %c0_119] : memref<8x2x128xf32, #tpu.memory_space<vmem>>, vector<1x1x128xf32>
    %125 = vector.shape_cast %124 : vector<1x1x128xf32> to vector<1x128xf32>
    %126 = vector.shape_cast %123 : vector<1x128xf32> to vector<1x1x128xf32>
    tpu.vector_store %arg6[%c5_117, %c0_118, %c0_119], %126 {strides = array<i32>} : memref<8x2x128xf32, #tpu.memory_space<vmem>>, vector<1x1x128xf32>,
    %127 = arith.index_cast %121 : i32 to index
    %c0_120 = arith.constant 0 : index
    %128 = vector.load %arg2[%127, %c0_120] : memref<20x128xf32, #tpu.memory_space<vmem>>, vector<1x128xf32>
    %c5_121 = arith.constant 5 : index
    %c0_122 = arith.constant 0 : index
    %c0_123 = arith.constant 0 : index
    %129 = vector.load %arg7[%c5_121, %c0_122, %c0_123] : memref<8x2x128xf32, #tpu.memory_space<vmem>>, vector<1x1x128xf32>
    %130 = vector.shape_cast %129 : vector<1x1x128xf32> to vector<1x128xf32>
    %131 = vector.shape_cast %128 : vector<1x128xf32> to vector<1x1x128xf32>
    tpu.vector_store %arg7[%c5_121, %c0_122, %c0_123], %131 {strides = array<i32>} : memref<8x2x128xf32, #tpu.memory_space<vmem>>, vector<1x1x128xf32>,
    %c1_124 = arith.constant 1 : index
    %c5_125 = arith.constant 5 : index
    %132 = memref.load %arg0[%c1_124, %c5_125] : memref<2x8xi32, #tpu.memory_space<smem>>
    %c1_126 = arith.constant 1 : index
    %c2_127 = arith.constant 2 : index
    %133 = memref.load %arg0[%c1_126, %c2_127] : memref<2x8xi32, #tpu.memory_space<smem>>
    %134 = arith.index_cast %132 : i32 to index
    %c0_128 = arith.constant 0 : index
    %135 = vector.load %arg1[%134, %c0_128] : memref<20x128xf32, #tpu.memory_space<vmem>>, vector<1x128xf32>
    %c5_129 = arith.constant 5 : index
    %c1_130 = arith.constant 1 : index
    %c0_131 = arith.constant 0 : index
    %136 = vector.load %arg6[%c5_129, %c1_130, %c0_131] : memref<8x2x128xf32, #tpu.memory_space<vmem>>, vector<1x1x128xf32>
    %137 = vector.shape_cast %136 : vector<1x1x128xf32> to vector<1x128xf32>
    %138 = vector.shape_cast %135 : vector<1x128xf32> to vector<1x1x128xf32>
    tpu.vector_store %arg6[%c5_129, %c1_130, %c0_131], %138 {strides = array<i32>} : memref<8x2x128xf32, #tpu.memory_space<vmem>>, vector<1x1x128xf32>,
    %139 = arith.index_cast %133 : i32 to index
    %c0_132 = arith.constant 0 : index
    %140 = vector.load %arg2[%139, %c0_132] : memref<20x128xf32, #tpu.memory_space<vmem>>, vector<1x128xf32>
    %c5_133 = arith.constant 5 : index
    %c1_134 = arith.constant 1 : index
    %c0_135 = arith.constant 0 : index
    %141 = vector.load %arg7[%c5_133, %c1_134, %c0_135] : memref<8x2x128xf32, #tpu.memory_space<vmem>>, vector<1x1x128xf32>
    %142 = vector.shape_cast %141 : vector<1x1x128xf32> to vector<1x128xf32>
    %143 = vector.shape_cast %140 : vector<1x128xf32> to vector<1x1x128xf32>
    tpu.vector_store %arg7[%c5_133, %c1_134, %c0_135], %143 {strides = array<i32>} : memref<8x2x128xf32, #tpu.memory_space<vmem>>, vector<1x1x128xf32>,
    %c0_136 = arith.constant 0 : index
    %c6_137 = arith.constant 6 : index
    %144 = memref.load %arg0[%c0_136, %c6_137] : memref<2x8xi32, #tpu.memory_space<smem>>
    %c0_138 = arith.constant 0 : index
    %c1_139 = arith.constant 1 : index
    %145 = memref.load %arg0[%c0_138, %c1_139] : memref<2x8xi32, #tpu.memory_space<smem>>
    %146 = arith.index_cast %144 : i32 to index
    %c0_140 = arith.constant 0 : index
    %147 = vector.load %arg1[%146, %c0_140] : memref<20x128xf32, #tpu.memory_space<vmem>>, vector<1x128xf32>
    %c6_141 = arith.constant 6 : index
    %c0_142 = arith.constant 0 : index
    %c0_143 = arith.constant 0 : index
    %148 = vector.load %arg6[%c6_141, %c0_142, %c0_143] : memref<8x2x128xf32, #tpu.memory_space<vmem>>, vector<1x1x128xf32>
    %149 = vector.shape_cast %148 : vector<1x1x128xf32> to vector<1x128xf32>
    %150 = vector.shape_cast %147 : vector<1x128xf32> to vector<1x1x128xf32>
    tpu.vector_store %arg6[%c6_141, %c0_142, %c0_143], %150 {strides = array<i32>} : memref<8x2x128xf32, #tpu.memory_space<vmem>>, vector<1x1x128xf32>,
    %151 = arith.index_cast %145 : i32 to index
    %c0_144 = arith.constant 0 : index
    %152 = vector.load %arg2[%151, %c0_144] : memref<20x128xf32, #tpu.memory_space<vmem>>, vector<1x128xf32>
    %c6_145 = arith.constant 6 : index
    %c0_146 = arith.constant 0 : index
    %c0_147 = arith.constant 0 : index
    %153 = vector.load %arg7[%c6_145, %c0_146, %c0_147] : memref<8x2x128xf32, #tpu.memory_space<vmem>>, vector<1x1x128xf32>
    %154 = vector.shape_cast %153 : vector<1x1x128xf32> to vector<1x128xf32>
    %155 = vector.shape_cast %152 : vector<1x128xf32> to vector<1x1x128xf32>
    tpu.vector_store %arg7[%c6_145, %c0_146, %c0_147], %155 {strides = array<i32>} : memref<8x2x128xf32, #tpu.memory_space<vmem>>, vector<1x1x128xf32>,
    %c1_148 = arith.constant 1 : index
    %c6_149 = arith.constant 6 : index
    %156 = memref.load %arg0[%c1_148, %c6_149] : memref<2x8xi32, #tpu.memory_space<smem>>
    %c1_150 = arith.constant 1 : index
    %c1_151 = arith.constant 1 : index
    %157 = memref.load %arg0[%c1_150, %c1_151] : memref<2x8xi32, #tpu.memory_space<smem>>
    %158 = arith.index_cast %156 : i32 to index
    %c0_152 = arith.constant 0 : index
    %159 = vector.load %arg1[%158, %c0_152] : memref<20x128xf32, #tpu.memory_space<vmem>>, vector<1x128xf32>
    %c6_153 = arith.constant 6 : index
    %c1_154 = arith.constant 1 : index
    %c0_155 = arith.constant 0 : index
    %160 = vector.load %arg6[%c6_153, %c1_154, %c0_155] : memref<8x2x128xf32, #tpu.memory_space<vmem>>, vector<1x1x128xf32>
    %161 = vector.shape_cast %160 : vector<1x1x128xf32> to vector<1x128xf32>
    %162 = vector.shape_cast %159 : vector<1x128xf32> to vector<1x1x128xf32>
    tpu.vector_store %arg6[%c6_153, %c1_154, %c0_155], %162 {strides = array<i32>} : memref<8x2x128xf32, #tpu.memory_space<vmem>>, vector<1x1x128xf32>,
    %163 = arith.index_cast %157 : i32 to index
    %c0_156 = arith.constant 0 : index
    %164 = vector.load %arg2[%163, %c0_156] : memref<20x128xf32, #tpu.memory_space<vmem>>, vector<1x128xf32>
    %c6_157 = arith.constant 6 : index
    %c1_158 = arith.constant 1 : index
    %c0_159 = arith.constant 0 : index
    %165 = vector.load %arg7[%c6_157, %c1_158, %c0_159] : memref<8x2x128xf32, #tpu.memory_space<vmem>>, vector<1x1x128xf32>
    %166 = vector.shape_cast %165 : vector<1x1x128xf32> to vector<1x128xf32>
    %167 = vector.shape_cast %164 : vector<1x128xf32> to vector<1x1x128xf32>
    tpu.vector_store %arg7[%c6_157, %c1_158, %c0_159], %167 {strides = array<i32>} : memref<8x2x128xf32, #tpu.memory_space<vmem>>, vector<1x1x128xf32>,
    %c0_160 = arith.constant 0 : index
    %c7_161 = arith.constant 7 : index
    %168 = memref.load %arg0[%c0_160, %c7_161] : memref<2x8xi32, #tpu.memory_space<smem>>
    %c0_162 = arith.constant 0 : index
    %c0_163 = arith.constant 0 : index
    %169 = memref.load %arg0[%c0_162, %c0_163] : memref<2x8xi32, #tpu.memory_space<smem>>
    %170 = arith.index_cast %168 : i32 to index
    %c0_164 = arith.constant 0 : index
    %171 = vector.load %arg1[%170, %c0_164] : memref<20x128xf32, #tpu.memory_space<vmem>>, vector<1x128xf32>
    %c7_165 = arith.constant 7 : index
    %c0_166 = arith.constant 0 : index
    %c0_167 = arith.constant 0 : index
    %172 = vector.load %arg6[%c7_165, %c0_166, %c0_167] : memref<8x2x128xf32, #tpu.memory_space<vmem>>, vector<1x1x128xf32>
    %173 = vector.shape_cast %172 : vector<1x1x128xf32> to vector<1x128xf32>
    %174 = vector.shape_cast %171 : vector<1x128xf32> to vector<1x1x128xf32>
    tpu.vector_store %arg6[%c7_165, %c0_166, %c0_167], %174 {strides = array<i32>} : memref<8x2x128xf32, #tpu.memory_space<vmem>>, vector<1x1x128xf32>,
    %175 = arith.index_cast %169 : i32 to index
    %c0_168 = arith.constant 0 : index
    %176 = vector.load %arg2[%175, %c0_168] : memref<20x128xf32, #tpu.memory_space<vmem>>, vector<1x128xf32>
    %c7_169 = arith.constant 7 : index
    %c0_170 = arith.constant 0 : index
    %c0_171 = arith.constant 0 : index
    %177 = vector.load %arg7[%c7_169, %c0_170, %c0_171] : memref<8x2x128xf32, #tpu.memory_space<vmem>>, vector<1x1x128xf32>
    %178 = vector.shape_cast %177 : vector<1x1x128xf32> to vector<1x128xf32>
    %179 = vector.shape_cast %176 : vector<1x128xf32> to vector<1x1x128xf32>
    tpu.vector_store %arg7[%c7_169, %c0_170, %c0_171], %179 {strides = array<i32>} : memref<8x2x128xf32, #tpu.memory_space<vmem>>, vector<1x1x128xf32>,
    %c1_172 = arith.constant 1 : index
    %c7_173 = arith.constant 7 : index
    %180 = memref.load %arg0[%c1_172, %c7_173] : memref<2x8xi32, #tpu.memory_space<smem>>
    %c1_174 = arith.constant 1 : index
    %c0_175 = arith.constant 0 : index
    %181 = memref.load %arg0[%c1_174, %c0_175] : memref<2x8xi32, #tpu.memory_space<smem>>
    %182 = arith.index_cast %180 : i32 to index
    %c0_176 = arith.constant 0 : index
    %183 = vector.load %arg1[%182, %c0_176] : memref<20x128xf32, #tpu.memory_space<vmem>>, vector<1x128xf32>
    %c7_177 = arith.constant 7 : index
    %c1_178 = arith.constant 1 : index
    %c0_179 = arith.constant 0 : index
    %184 = vector.load %arg6[%c7_177, %c1_178, %c0_179] : memref<8x2x128xf32, #tpu.memory_space<vmem>>, vector<1x1x128xf32>
    %185 = vector.shape_cast %184 : vector<1x1x128xf32> to vector<1x128xf32>
    %186 = vector.shape_cast %183 : vector<1x128xf32> to vector<1x1x128xf32>
    tpu.vector_store %arg6[%c7_177, %c1_178, %c0_179], %186 {strides = array<i32>} : memref<8x2x128xf32, #tpu.memory_space<vmem>>, vector<1x1x128xf32>,
    %187 = arith.index_cast %181 : i32 to index
    %c0_180 = arith.constant 0 : index
    %188 = vector.load %arg2[%187, %c0_180] : memref<20x128xf32, #tpu.memory_space<vmem>>, vector<1x128xf32>
    %c7_181 = arith.constant 7 : index
    %c1_182 = arith.constant 1 : index
    %c0_183 = arith.constant 0 : index
    %189 = vector.load %arg7[%c7_181, %c1_182, %c0_183] : memref<8x2x128xf32, #tpu.memory_space<vmem>>, vector<1x1x128xf32>
    %190 = vector.shape_cast %189 : vector<1x1x128xf32> to vector<1x128xf32>
    %191 = vector.shape_cast %188 : vector<1x128xf32> to vector<1x1x128xf32>
    tpu.vector_store %arg7[%c7_181, %c1_182, %c0_183], %191 {strides = array<i32>} : memref<8x2x128xf32, #tpu.memory_space<vmem>>, vector<1x1x128xf32>,
    %c0_184 = arith.constant 0 : index
    %c0_185 = arith.constant 0 : index
    %192 = vector.load %arg3[%c0_184, %c0_185] : memref<32x128xf32, #tpu.memory_space<vmem>>, vector<32x128xf32>
    %c0_186 = arith.constant 0 : index
    %c0_187 = arith.constant 0 : index
    %193 = vector.load %arg4[%c0_186, %c0_187] : memref<32x128xf32, #tpu.memory_space<vmem>>, vector<32x128xf32>
    %cst = arith.constant 0.000000e+00 : f32
    %194 = vector.broadcast %cst : f32 to vector<2x32xf32>
    %cst_188 = arith.constant 0.000000e+00 : f32
    %195 = vector.broadcast %cst_188 : f32 to vector<2x32xf32>
    %cst_189 = arith.constant 0.000000e+00 : f32
    %196 = vector.broadcast %cst_189 : f32 to vector<2x32xf32>
    %cst_190 = arith.constant 0.000000e+00 : f32
    %197 = vector.broadcast %cst_190 : f32 to vector<2x32xf32>
    %c0_191 = arith.constant 0 : index
    %c0_192 = arith.constant 0 : index
    %c0_193 = arith.constant 0 : index
    %198 = vector.load %arg6[%c0_191, %c0_192, %c0_193] : memref<8x2x128xf32, #tpu.memory_space<vmem>>, vector<1x2x128xf32>
    %199 = vector.shape_cast %198 : vector<1x2x128xf32> to vector<2x128xf32>
    %cst_194 = arith.constant dense<0.000000e+00> : vector<2x128xf32>
    %200 = tpu.matmul %194, %192, %cst_194 {dimension_numbers = #tpu.dot_dimension_numbers<[1], [0], [0], [1], [0, 0, 1, 1], [], []>} : vector<2x32xf32>, vector<32x128xf32>, vector<2x128xf32> -> vector<2x128xf32>
    %201 = arith.addf %199, %200 : vector<2x128xf32>
    %c0_195 = arith.constant 0 : index
    %c0_196 = arith.constant 0 : index
    %c0_197 = arith.constant 0 : index
    %202 = vector.load %arg7[%c0_195, %c0_196, %c0_197] : memref<8x2x128xf32, #tpu.memory_space<vmem>>, vector<1x2x128xf32>
    %203 = vector.shape_cast %202 : vector<1x2x128xf32> to vector<2x128xf32>
    %cst_198 = arith.constant dense<0.000000e+00> : vector<2x128xf32>
    %204 = tpu.matmul %196, %193, %cst_198 {dimension_numbers = #tpu.dot_dimension_numbers<[1], [0], [0], [1], [0, 0, 1, 1], [], []>} : vector<2x32xf32>, vector<32x128xf32>, vector<2x128xf32> -> vector<2x128xf32>
    %205 = arith.addf %203, %204 : vector<2x128xf32>
    %206 = arith.negf %201 : vector<2x128xf32>
    %207 = math.exp %206 : vector<2x128xf32>
    %cst_199 = arith.constant 1.000000e+00 : f32
    %208 = vector.broadcast %cst_199 : f32 to vector<2x128xf32>
    %209 = arith.addf %208, %207 : vector<2x128xf32>
    %210 = arith.divf %208, %209 : vector<2x128xf32>
    %211 = arith.negf %205 : vector<2x128xf32>
    %212 = math.exp %211 : vector<2x128xf32>
    %cst_200 = arith.constant 1.000000e+00 : f32
    %213 = vector.broadcast %cst_200 : f32 to vector<2x128xf32>
    %214 = arith.addf %213, %212 : vector<2x128xf32>
    %215 = arith.divf %213, %214 : vector<2x128xf32>
    %216 = vector.extract_strided_slice %210 {offsets = [0, 32], sizes = [2, 32], strides = [1, 1]} : vector<2x128xf32> to vector<2x32xf32>
    %217 = arith.mulf %216, %195 : vector<2x32xf32>
    %218 = vector.extract_strided_slice %210 {offsets = [0, 0], sizes = [2, 32], strides = [1, 1]} : vector<2x128xf32> to vector<2x32xf32>
    %219 = vector.extract_strided_slice %201 {offsets = [0, 64], sizes = [2, 32], strides = [1, 1]} : vector<2x128xf32> to vector<2x32xf32>
    %220 = math.tanh %219 : vector<2x32xf32>
    %221 = arith.mulf %218, %220 : vector<2x32xf32>
    %222 = arith.addf %217, %221 : vector<2x32xf32>
    %223 = vector.extract_strided_slice %215 {offsets = [0, 32], sizes = [2, 32], strides = [1, 1]} : vector<2x128xf32> to vector<2x32xf32>
    %224 = arith.mulf %223, %197 : vector<2x32xf32>
    %225 = vector.extract_strided_slice %215 {offsets = [0, 0], sizes = [2, 32], strides = [1, 1]} : vector<2x128xf32> to vector<2x32xf32>
    %226 = vector.extract_strided_slice %205 {offsets = [0, 64], sizes = [2, 32], strides = [1, 1]} : vector<2x128xf32> to vector<2x32xf32>
    %227 = math.tanh %226 : vector<2x32xf32>
    %228 = arith.mulf %225, %227 : vector<2x32xf32>
    %229 = arith.addf %224, %228 : vector<2x32xf32>
    %230 = vector.extract_strided_slice %210 {offsets = [0, 96], sizes = [2, 32], strides = [1, 1]} : vector<2x128xf32> to vector<2x32xf32>
    %231 = math.tanh %222 : vector<2x32xf32>
    %232 = arith.mulf %230, %231 : vector<2x32xf32>
    %233 = vector.extract_strided_slice %215 {offsets = [0, 96], sizes = [2, 32], strides = [1, 1]} : vector<2x128xf32> to vector<2x32xf32>
    %234 = math.tanh %229 : vector<2x32xf32>
    %235 = arith.mulf %233, %234 : vector<2x32xf32>
    %c1_201 = arith.constant 1 : index
    %c0_202 = arith.constant 0 : index
    %c0_203 = arith.constant 0 : index
    %236 = vector.load %arg6[%c1_201, %c0_202, %c0_203] : memref<8x2x128xf32, #tpu.memory_space<vmem>>, vector<1x2x128xf32>
    %237 = vector.shape_cast %236 : vector<1x2x128xf32> to vector<2x128xf32>
    %cst_204 = arith.constant dense<0.000000e+00> : vector<2x128xf32>
    %238 = tpu.matmul %232, %192, %cst_204 {dimension_numbers = #tpu.dot_dimension_numbers<[1], [0], [0], [1], [0, 0, 1, 1], [], []>} : vector<2x32xf32>, vector<32x128xf32>, vector<2x128xf32> -> vector<2x128xf32>
    %239 = arith.addf %237, %238 : vector<2x128xf32>
    %c1_205 = arith.constant 1 : index
    %c0_206 = arith.constant 0 : index
    %c0_207 = arith.constant 0 : index
    %240 = vector.load %arg7[%c1_205, %c0_206, %c0_207] : memref<8x2x128xf32, #tpu.memory_space<vmem>>, vector<1x2x128xf32>
    %241 = vector.shape_cast %240 : vector<1x2x128xf32> to vector<2x128xf32>
    %cst_208 = arith.constant dense<0.000000e+00> : vector<2x128xf32>
    %242 = tpu.matmul %235, %193, %cst_208 {dimension_numbers = #tpu.dot_dimension_numbers<[1], [0], [0], [1], [0, 0, 1, 1], [], []>} : vector<2x32xf32>, vector<32x128xf32>, vector<2x128xf32> -> vector<2x128xf32>
    %243 = arith.addf %241, %242 : vector<2x128xf32>
    %244 = arith.negf %239 : vector<2x128xf32>
    %245 = math.exp %244 : vector<2x128xf32>
    %cst_209 = arith.constant 1.000000e+00 : f32
    %246 = vector.broadcast %cst_209 : f32 to vector<2x128xf32>
    %247 = arith.addf %246, %245 : vector<2x128xf32>
    %248 = arith.divf %246, %247 : vector<2x128xf32>
    %249 = arith.negf %243 : vector<2x128xf32>
    %250 = math.exp %249 : vector<2x128xf32>
    %cst_210 = arith.constant 1.000000e+00 : f32
    %251 = vector.broadcast %cst_210 : f32 to vector<2x128xf32>
    %252 = arith.addf %251, %250 : vector<2x128xf32>
    %253 = arith.divf %251, %252 : vector<2x128xf32>
    %254 = vector.extract_strided_slice %248 {offsets = [0, 32], sizes = [2, 32], strides = [1, 1]} : vector<2x128xf32> to vector<2x32xf32>
    %255 = arith.mulf %254, %222 : vector<2x32xf32>
    %256 = vector.extract_strided_slice %248 {offsets = [0, 0], sizes = [2, 32], strides = [1, 1]} : vector<2x128xf32> to vector<2x32xf32>
    %257 = vector.extract_strided_slice %239 {offsets = [0, 64], sizes = [2, 32], strides = [1, 1]} : vector<2x128xf32> to vector<2x32xf32>
    %258 = math.tanh %257 : vector<2x32xf32>
    %259 = arith.mulf %256, %258 : vector<2x32xf32>
    %260 = arith.addf %255, %259 : vector<2x32xf32>
    %261 = vector.extract_strided_slice %253 {offsets = [0, 32], sizes = [2, 32], strides = [1, 1]} : vector<2x128xf32> to vector<2x32xf32>
    %262 = arith.mulf %261, %229 : vector<2x32xf32>
    %263 = vector.extract_strided_slice %253 {offsets = [0, 0], sizes = [2, 32], strides = [1, 1]} : vector<2x128xf32> to vector<2x32xf32>
    %264 = vector.extract_strided_slice %243 {offsets = [0, 64], sizes = [2, 32], strides = [1, 1]} : vector<2x128xf32> to vector<2x32xf32>
    %265 = math.tanh %264 : vector<2x32xf32>
    %266 = arith.mulf %263, %265 : vector<2x32xf32>
    %267 = arith.addf %262, %266 : vector<2x32xf32>
    %268 = vector.extract_strided_slice %248 {offsets = [0, 96], sizes = [2, 32], strides = [1, 1]} : vector<2x128xf32> to vector<2x32xf32>
    %269 = math.tanh %260 : vector<2x32xf32>
    %270 = arith.mulf %268, %269 : vector<2x32xf32>
    %271 = vector.extract_strided_slice %253 {offsets = [0, 96], sizes = [2, 32], strides = [1, 1]} : vector<2x128xf32> to vector<2x32xf32>
    %272 = math.tanh %267 : vector<2x32xf32>
    %273 = arith.mulf %271, %272 : vector<2x32xf32>
    %c2_211 = arith.constant 2 : index
    %c0_212 = arith.constant 0 : index
    %c0_213 = arith.constant 0 : index
    %274 = vector.load %arg6[%c2_211, %c0_212, %c0_213] : memref<8x2x128xf32, #tpu.memory_space<vmem>>, vector<1x2x128xf32>
    %275 = vector.shape_cast %274 : vector<1x2x128xf32> to vector<2x128xf32>
    %cst_214 = arith.constant dense<0.000000e+00> : vector<2x128xf32>
    %276 = tpu.matmul %270, %192, %cst_214 {dimension_numbers = #tpu.dot_dimension_numbers<[1], [0], [0], [1], [0, 0, 1, 1], [], []>} : vector<2x32xf32>, vector<32x128xf32>, vector<2x128xf32> -> vector<2x128xf32>
    %277 = arith.addf %275, %276 : vector<2x128xf32>
    %c2_215 = arith.constant 2 : index
    %c0_216 = arith.constant 0 : index
    %c0_217 = arith.constant 0 : index
    %278 = vector.load %arg7[%c2_215, %c0_216, %c0_217] : memref<8x2x128xf32, #tpu.memory_space<vmem>>, vector<1x2x128xf32>
    %279 = vector.shape_cast %278 : vector<1x2x128xf32> to vector<2x128xf32>
    %cst_218 = arith.constant dense<0.000000e+00> : vector<2x128xf32>
    %280 = tpu.matmul %273, %193, %cst_218 {dimension_numbers = #tpu.dot_dimension_numbers<[1], [0], [0], [1], [0, 0, 1, 1], [], []>} : vector<2x32xf32>, vector<32x128xf32>, vector<2x128xf32> -> vector<2x128xf32>
    %281 = arith.addf %279, %280 : vector<2x128xf32>
    %282 = arith.negf %277 : vector<2x128xf32>
    %283 = math.exp %282 : vector<2x128xf32>
    %cst_219 = arith.constant 1.000000e+00 : f32
    %284 = vector.broadcast %cst_219 : f32 to vector<2x128xf32>
    %285 = arith.addf %284, %283 : vector<2x128xf32>
    %286 = arith.divf %284, %285 : vector<2x128xf32>
    %287 = arith.negf %281 : vector<2x128xf32>
    %288 = math.exp %287 : vector<2x128xf32>
    %cst_220 = arith.constant 1.000000e+00 : f32
    %289 = vector.broadcast %cst_220 : f32 to vector<2x128xf32>
    %290 = arith.addf %289, %288 : vector<2x128xf32>
    %291 = arith.divf %289, %290 : vector<2x128xf32>
    %292 = vector.extract_strided_slice %286 {offsets = [0, 32], sizes = [2, 32], strides = [1, 1]} : vector<2x128xf32> to vector<2x32xf32>
    %293 = arith.mulf %292, %260 : vector<2x32xf32>
    %294 = vector.extract_strided_slice %286 {offsets = [0, 0], sizes = [2, 32], strides = [1, 1]} : vector<2x128xf32> to vector<2x32xf32>
    %295 = vector.extract_strided_slice %277 {offsets = [0, 64], sizes = [2, 32], strides = [1, 1]} : vector<2x128xf32> to vector<2x32xf32>
    %296 = math.tanh %295 : vector<2x32xf32>
    %297 = arith.mulf %294, %296 : vector<2x32xf32>
    %298 = arith.addf %293, %297 : vector<2x32xf32>
    %299 = vector.extract_strided_slice %291 {offsets = [0, 32], sizes = [2, 32], strides = [1, 1]} : vector<2x128xf32> to vector<2x32xf32>
    %300 = arith.mulf %299, %267 : vector<2x32xf32>
    %301 = vector.extract_strided_slice %291 {offsets = [0, 0], sizes = [2, 32], strides = [1, 1]} : vector<2x128xf32> to vector<2x32xf32>
    %302 = vector.extract_strided_slice %281 {offsets = [0, 64], sizes = [2, 32], strides = [1, 1]} : vector<2x128xf32> to vector<2x32xf32>
    %303 = math.tanh %302 : vector<2x32xf32>
    %304 = arith.mulf %301, %303 : vector<2x32xf32>
    %305 = arith.addf %300, %304 : vector<2x32xf32>
    %306 = vector.extract_strided_slice %286 {offsets = [0, 96], sizes = [2, 32], strides = [1, 1]} : vector<2x128xf32> to vector<2x32xf32>
    %307 = math.tanh %298 : vector<2x32xf32>
    %308 = arith.mulf %306, %307 : vector<2x32xf32>
    %309 = vector.extract_strided_slice %291 {offsets = [0, 96], sizes = [2, 32], strides = [1, 1]} : vector<2x128xf32> to vector<2x32xf32>
    %310 = math.tanh %305 : vector<2x32xf32>
    %311 = arith.mulf %309, %310 : vector<2x32xf32>
    %c3_221 = arith.constant 3 : index
    %c0_222 = arith.constant 0 : index
    %c0_223 = arith.constant 0 : index
    %312 = vector.load %arg6[%c3_221, %c0_222, %c0_223] : memref<8x2x128xf32, #tpu.memory_space<vmem>>, vector<1x2x128xf32>
    %313 = vector.shape_cast %312 : vector<1x2x128xf32> to vector<2x128xf32>
    %cst_224 = arith.constant dense<0.000000e+00> : vector<2x128xf32>
    %314 = tpu.matmul %308, %192, %cst_224 {dimension_numbers = #tpu.dot_dimension_numbers<[1], [0], [0], [1], [0, 0, 1, 1], [], []>} : vector<2x32xf32>, vector<32x128xf32>, vector<2x128xf32> -> vector<2x128xf32>
    %315 = arith.addf %313, %314 : vector<2x128xf32>
    %c3_225 = arith.constant 3 : index
    %c0_226 = arith.constant 0 : index
    %c0_227 = arith.constant 0 : index
    %316 = vector.load %arg7[%c3_225, %c0_226, %c0_227] : memref<8x2x128xf32, #tpu.memory_space<vmem>>, vector<1x2x128xf32>
    %317 = vector.shape_cast %316 : vector<1x2x128xf32> to vector<2x128xf32>
    %cst_228 = arith.constant dense<0.000000e+00> : vector<2x128xf32>
    %318 = tpu.matmul %311, %193, %cst_228 {dimension_numbers = #tpu.dot_dimension_numbers<[1], [0], [0], [1], [0, 0, 1, 1], [], []>} : vector<2x32xf32>, vector<32x128xf32>, vector<2x128xf32> -> vector<2x128xf32>
    %319 = arith.addf %317, %318 : vector<2x128xf32>
    %320 = arith.negf %315 : vector<2x128xf32>
    %321 = math.exp %320 : vector<2x128xf32>
    %cst_229 = arith.constant 1.000000e+00 : f32
    %322 = vector.broadcast %cst_229 : f32 to vector<2x128xf32>
    %323 = arith.addf %322, %321 : vector<2x128xf32>
    %324 = arith.divf %322, %323 : vector<2x128xf32>
    %325 = arith.negf %319 : vector<2x128xf32>
    %326 = math.exp %325 : vector<2x128xf32>
    %cst_230 = arith.constant 1.000000e+00 : f32
    %327 = vector.broadcast %cst_230 : f32 to vector<2x128xf32>
    %328 = arith.addf %327, %326 : vector<2x128xf32>
    %329 = arith.divf %327, %328 : vector<2x128xf32>
    %330 = vector.extract_strided_slice %324 {offsets = [0, 32], sizes = [2, 32], strides = [1, 1]} : vector<2x128xf32> to vector<2x32xf32>
    %331 = arith.mulf %330, %298 : vector<2x32xf32>
    %332 = vector.extract_strided_slice %324 {offsets = [0, 0], sizes = [2, 32], strides = [1, 1]} : vector<2x128xf32> to vector<2x32xf32>
    %333 = vector.extract_strided_slice %315 {offsets = [0, 64], sizes = [2, 32], strides = [1, 1]} : vector<2x128xf32> to vector<2x32xf32>
    %334 = math.tanh %333 : vector<2x32xf32>
    %335 = arith.mulf %332, %334 : vector<2x32xf32>
    %336 = arith.addf %331, %335 : vector<2x32xf32>
    %337 = vector.extract_strided_slice %329 {offsets = [0, 32], sizes = [2, 32], strides = [1, 1]} : vector<2x128xf32> to vector<2x32xf32>
    %338 = arith.mulf %337, %305 : vector<2x32xf32>
    %339 = vector.extract_strided_slice %329 {offsets = [0, 0], sizes = [2, 32], strides = [1, 1]} : vector<2x128xf32> to vector<2x32xf32>
    %340 = vector.extract_strided_slice %319 {offsets = [0, 64], sizes = [2, 32], strides = [1, 1]} : vector<2x128xf32> to vector<2x32xf32>
    %341 = math.tanh %340 : vector<2x32xf32>
    %342 = arith.mulf %339, %341 : vector<2x32xf32>
    %343 = arith.addf %338, %342 : vector<2x32xf32>
    %344 = vector.extract_strided_slice %324 {offsets = [0, 96], sizes = [2, 32], strides = [1, 1]} : vector<2x128xf32> to vector<2x32xf32>
    %345 = math.tanh %336 : vector<2x32xf32>
    %346 = arith.mulf %344, %345 : vector<2x32xf32>
    %347 = vector.extract_strided_slice %329 {offsets = [0, 96], sizes = [2, 32], strides = [1, 1]} : vector<2x128xf32> to vector<2x32xf32>
    %348 = math.tanh %343 : vector<2x32xf32>
    %349 = arith.mulf %347, %348 : vector<2x32xf32>
    %c4_231 = arith.constant 4 : index
    %c0_232 = arith.constant 0 : index
    %c0_233 = arith.constant 0 : index
    %350 = vector.load %arg6[%c4_231, %c0_232, %c0_233] : memref<8x2x128xf32, #tpu.memory_space<vmem>>, vector<1x2x128xf32>
    %351 = vector.shape_cast %350 : vector<1x2x128xf32> to vector<2x128xf32>
    %cst_234 = arith.constant dense<0.000000e+00> : vector<2x128xf32>
    %352 = tpu.matmul %346, %192, %cst_234 {dimension_numbers = #tpu.dot_dimension_numbers<[1], [0], [0], [1], [0, 0, 1, 1], [], []>} : vector<2x32xf32>, vector<32x128xf32>, vector<2x128xf32> -> vector<2x128xf32>
    %353 = arith.addf %351, %352 : vector<2x128xf32>
    %c4_235 = arith.constant 4 : index
    %c0_236 = arith.constant 0 : index
    %c0_237 = arith.constant 0 : index
    %354 = vector.load %arg7[%c4_235, %c0_236, %c0_237] : memref<8x2x128xf32, #tpu.memory_space<vmem>>, vector<1x2x128xf32>
    %355 = vector.shape_cast %354 : vector<1x2x128xf32> to vector<2x128xf32>
    %cst_238 = arith.constant dense<0.000000e+00> : vector<2x128xf32>
    %356 = tpu.matmul %349, %193, %cst_238 {dimension_numbers = #tpu.dot_dimension_numbers<[1], [0], [0], [1], [0, 0, 1, 1], [], []>} : vector<2x32xf32>, vector<32x128xf32>, vector<2x128xf32> -> vector<2x128xf32>
    %357 = arith.addf %355, %356 : vector<2x128xf32>
    %358 = arith.negf %353 : vector<2x128xf32>
    %359 = math.exp %358 : vector<2x128xf32>
    %cst_239 = arith.constant 1.000000e+00 : f32
    %360 = vector.broadcast %cst_239 : f32 to vector<2x128xf32>
    %361 = arith.addf %360, %359 : vector<2x128xf32>
    %362 = arith.divf %360, %361 : vector<2x128xf32>
    %363 = arith.negf %357 : vector<2x128xf32>
    %364 = math.exp %363 : vector<2x128xf32>
    %cst_240 = arith.constant 1.000000e+00 : f32
    %365 = vector.broadcast %cst_240 : f32 to vector<2x128xf32>
    %366 = arith.addf %365, %364 : vector<2x128xf32>
    %367 = arith.divf %365, %366 : vector<2x128xf32>
    %368 = vector.extract_strided_slice %362 {offsets = [0, 32], sizes = [2, 32], strides = [1, 1]} : vector<2x128xf32> to vector<2x32xf32>
    %369 = arith.mulf %368, %336 : vector<2x32xf32>
    %370 = vector.extract_strided_slice %362 {offsets = [0, 0], sizes = [2, 32], strides = [1, 1]} : vector<2x128xf32> to vector<2x32xf32>
    %371 = vector.extract_strided_slice %353 {offsets = [0, 64], sizes = [2, 32], strides = [1, 1]} : vector<2x128xf32> to vector<2x32xf32>
    %372 = math.tanh %371 : vector<2x32xf32>
    %373 = arith.mulf %370, %372 : vector<2x32xf32>
    %374 = arith.addf %369, %373 : vector<2x32xf32>
    %375 = vector.extract_strided_slice %367 {offsets = [0, 32], sizes = [2, 32], strides = [1, 1]} : vector<2x128xf32> to vector<2x32xf32>
    %376 = arith.mulf %375, %343 : vector<2x32xf32>
    %377 = vector.extract_strided_slice %367 {offsets = [0, 0], sizes = [2, 32], strides = [1, 1]} : vector<2x128xf32> to vector<2x32xf32>
    %378 = vector.extract_strided_slice %357 {offsets = [0, 64], sizes = [2, 32], strides = [1, 1]} : vector<2x128xf32> to vector<2x32xf32>
    %379 = math.tanh %378 : vector<2x32xf32>
    %380 = arith.mulf %377, %379 : vector<2x32xf32>
    %381 = arith.addf %376, %380 : vector<2x32xf32>
    %382 = vector.extract_strided_slice %362 {offsets = [0, 96], sizes = [2, 32], strides = [1, 1]} : vector<2x128xf32> to vector<2x32xf32>
    %383 = math.tanh %374 : vector<2x32xf32>
    %384 = arith.mulf %382, %383 : vector<2x32xf32>
    %385 = vector.extract_strided_slice %367 {offsets = [0, 96], sizes = [2, 32], strides = [1, 1]} : vector<2x128xf32> to vector<2x32xf32>
    %386 = math.tanh %381 : vector<2x32xf32>
    %387 = arith.mulf %385, %386 : vector<2x32xf32>
    %c5_241 = arith.constant 5 : index
    %c0_242 = arith.constant 0 : index
    %c0_243 = arith.constant 0 : index
    %388 = vector.load %arg6[%c5_241, %c0_242, %c0_243] : memref<8x2x128xf32, #tpu.memory_space<vmem>>, vector<1x2x128xf32>
    %389 = vector.shape_cast %388 : vector<1x2x128xf32> to vector<2x128xf32>
    %cst_244 = arith.constant dense<0.000000e+00> : vector<2x128xf32>
    %390 = tpu.matmul %384, %192, %cst_244 {dimension_numbers = #tpu.dot_dimension_numbers<[1], [0], [0], [1], [0, 0, 1, 1], [], []>} : vector<2x32xf32>, vector<32x128xf32>, vector<2x128xf32> -> vector<2x128xf32>
    %391 = arith.addf %389, %390 : vector<2x128xf32>
    %c5_245 = arith.constant 5 : index
    %c0_246 = arith.constant 0 : index
    %c0_247 = arith.constant 0 : index
    %392 = vector.load %arg7[%c5_245, %c0_246, %c0_247] : memref<8x2x128xf32, #tpu.memory_space<vmem>>, vector<1x2x128xf32>
    %393 = vector.shape_cast %392 : vector<1x2x128xf32> to vector<2x128xf32>
    %cst_248 = arith.constant dense<0.000000e+00> : vector<2x128xf32>
    %394 = tpu.matmul %387, %193, %cst_248 {dimension_numbers = #tpu.dot_dimension_numbers<[1], [0], [0], [1], [0, 0, 1, 1], [], []>} : vector<2x32xf32>, vector<32x128xf32>, vector<2x128xf32> -> vector<2x128xf32>
    %395 = arith.addf %393, %394 : vector<2x128xf32>
    %396 = arith.negf %391 : vector<2x128xf32>
    %397 = math.exp %396 : vector<2x128xf32>
    %cst_249 = arith.constant 1.000000e+00 : f32
    %398 = vector.broadcast %cst_249 : f32 to vector<2x128xf32>
    %399 = arith.addf %398, %397 : vector<2x128xf32>
    %400 = arith.divf %398, %399 : vector<2x128xf32>
    %401 = arith.negf %395 : vector<2x128xf32>
    %402 = math.exp %401 : vector<2x128xf32>
    %cst_250 = arith.constant 1.000000e+00 : f32
    %403 = vector.broadcast %cst_250 : f32 to vector<2x128xf32>
    %404 = arith.addf %403, %402 : vector<2x128xf32>
    %405 = arith.divf %403, %404 : vector<2x128xf32>
    %406 = vector.extract_strided_slice %400 {offsets = [0, 32], sizes = [2, 32], strides = [1, 1]} : vector<2x128xf32> to vector<2x32xf32>
    %407 = arith.mulf %406, %374 : vector<2x32xf32>
    %408 = vector.extract_strided_slice %400 {offsets = [0, 0], sizes = [2, 32], strides = [1, 1]} : vector<2x128xf32> to vector<2x32xf32>
    %409 = vector.extract_strided_slice %391 {offsets = [0, 64], sizes = [2, 32], strides = [1, 1]} : vector<2x128xf32> to vector<2x32xf32>
    %410 = math.tanh %409 : vector<2x32xf32>
    %411 = arith.mulf %408, %410 : vector<2x32xf32>
    %412 = arith.addf %407, %411 : vector<2x32xf32>
    %413 = vector.extract_strided_slice %405 {offsets = [0, 32], sizes = [2, 32], strides = [1, 1]} : vector<2x128xf32> to vector<2x32xf32>
    %414 = arith.mulf %413, %381 : vector<2x32xf32>
    %415 = vector.extract_strided_slice %405 {offsets = [0, 0], sizes = [2, 32], strides = [1, 1]} : vector<2x128xf32> to vector<2x32xf32>
    %416 = vector.extract_strided_slice %395 {offsets = [0, 64], sizes = [2, 32], strides = [1, 1]} : vector<2x128xf32> to vector<2x32xf32>
    %417 = math.tanh %416 : vector<2x32xf32>
    %418 = arith.mulf %415, %417 : vector<2x32xf32>
    %419 = arith.addf %414, %418 : vector<2x32xf32>
    %420 = vector.extract_strided_slice %400 {offsets = [0, 96], sizes = [2, 32], strides = [1, 1]} : vector<2x128xf32> to vector<2x32xf32>
    %421 = math.tanh %412 : vector<2x32xf32>
    %422 = arith.mulf %420, %421 : vector<2x32xf32>
    %423 = vector.extract_strided_slice %405 {offsets = [0, 96], sizes = [2, 32], strides = [1, 1]} : vector<2x128xf32> to vector<2x32xf32>
    %424 = math.tanh %419 : vector<2x32xf32>
    %425 = arith.mulf %423, %424 : vector<2x32xf32>
    %c6_251 = arith.constant 6 : index
    %c0_252 = arith.constant 0 : index
    %c0_253 = arith.constant 0 : index
    %426 = vector.load %arg6[%c6_251, %c0_252, %c0_253] : memref<8x2x128xf32, #tpu.memory_space<vmem>>, vector<1x2x128xf32>
    %427 = vector.shape_cast %426 : vector<1x2x128xf32> to vector<2x128xf32>
    %cst_254 = arith.constant dense<0.000000e+00> : vector<2x128xf32>
    %428 = tpu.matmul %422, %192, %cst_254 {dimension_numbers = #tpu.dot_dimension_numbers<[1], [0], [0], [1], [0, 0, 1, 1], [], []>} : vector<2x32xf32>, vector<32x128xf32>, vector<2x128xf32> -> vector<2x128xf32>
    %429 = arith.addf %427, %428 : vector<2x128xf32>
    %c6_255 = arith.constant 6 : index
    %c0_256 = arith.constant 0 : index
    %c0_257 = arith.constant 0 : index
    %430 = vector.load %arg7[%c6_255, %c0_256, %c0_257] : memref<8x2x128xf32, #tpu.memory_space<vmem>>, vector<1x2x128xf32>
    %431 = vector.shape_cast %430 : vector<1x2x128xf32> to vector<2x128xf32>
    %cst_258 = arith.constant dense<0.000000e+00> : vector<2x128xf32>
    %432 = tpu.matmul %425, %193, %cst_258 {dimension_numbers = #tpu.dot_dimension_numbers<[1], [0], [0], [1], [0, 0, 1, 1], [], []>} : vector<2x32xf32>, vector<32x128xf32>, vector<2x128xf32> -> vector<2x128xf32>
    %433 = arith.addf %431, %432 : vector<2x128xf32>
    %434 = arith.negf %429 : vector<2x128xf32>
    %435 = math.exp %434 : vector<2x128xf32>
    %cst_259 = arith.constant 1.000000e+00 : f32
    %436 = vector.broadcast %cst_259 : f32 to vector<2x128xf32>
    %437 = arith.addf %436, %435 : vector<2x128xf32>
    %438 = arith.divf %436, %437 : vector<2x128xf32>
    %439 = arith.negf %433 : vector<2x128xf32>
    %440 = math.exp %439 : vector<2x128xf32>
    %cst_260 = arith.constant 1.000000e+00 : f32
    %441 = vector.broadcast %cst_260 : f32 to vector<2x128xf32>
    %442 = arith.addf %441, %440 : vector<2x128xf32>
    %443 = arith.divf %441, %442 : vector<2x128xf32>
    %444 = vector.extract_strided_slice %438 {offsets = [0, 32], sizes = [2, 32], strides = [1, 1]} : vector<2x128xf32> to vector<2x32xf32>
    %445 = arith.mulf %444, %412 : vector<2x32xf32>
    %446 = vector.extract_strided_slice %438 {offsets = [0, 0], sizes = [2, 32], strides = [1, 1]} : vector<2x128xf32> to vector<2x32xf32>
    %447 = vector.extract_strided_slice %429 {offsets = [0, 64], sizes = [2, 32], strides = [1, 1]} : vector<2x128xf32> to vector<2x32xf32>
    %448 = math.tanh %447 : vector<2x32xf32>
    %449 = arith.mulf %446, %448 : vector<2x32xf32>
    %450 = arith.addf %445, %449 : vector<2x32xf32>
    %451 = vector.extract_strided_slice %443 {offsets = [0, 32], sizes = [2, 32], strides = [1, 1]} : vector<2x128xf32> to vector<2x32xf32>
    %452 = arith.mulf %451, %419 : vector<2x32xf32>
    %453 = vector.extract_strided_slice %443 {offsets = [0, 0], sizes = [2, 32], strides = [1, 1]} : vector<2x128xf32> to vector<2x32xf32>
    %454 = vector.extract_strided_slice %433 {offsets = [0, 64], sizes = [2, 32], strides = [1, 1]} : vector<2x128xf32> to vector<2x32xf32>
    %455 = math.tanh %454 : vector<2x32xf32>
    %456 = arith.mulf %453, %455 : vector<2x32xf32>
    %457 = arith.addf %452, %456 : vector<2x32xf32>
    %458 = vector.extract_strided_slice %438 {offsets = [0, 96], sizes = [2, 32], strides = [1, 1]} : vector<2x128xf32> to vector<2x32xf32>
    %459 = math.tanh %450 : vector<2x32xf32>
    %460 = arith.mulf %458, %459 : vector<2x32xf32>
    %461 = vector.extract_strided_slice %443 {offsets = [0, 96], sizes = [2, 32], strides = [1, 1]} : vector<2x128xf32> to vector<2x32xf32>
    %462 = math.tanh %457 : vector<2x32xf32>
    %463 = arith.mulf %461, %462 : vector<2x32xf32>
    %c7_261 = arith.constant 7 : index
    %c0_262 = arith.constant 0 : index
    %c0_263 = arith.constant 0 : index
    %464 = vector.load %arg6[%c7_261, %c0_262, %c0_263] : memref<8x2x128xf32, #tpu.memory_space<vmem>>, vector<1x2x128xf32>
    %465 = vector.shape_cast %464 : vector<1x2x128xf32> to vector<2x128xf32>
    %cst_264 = arith.constant dense<0.000000e+00> : vector<2x128xf32>
    %466 = tpu.matmul %460, %192, %cst_264 {dimension_numbers = #tpu.dot_dimension_numbers<[1], [0], [0], [1], [0, 0, 1, 1], [], []>} : vector<2x32xf32>, vector<32x128xf32>, vector<2x128xf32> -> vector<2x128xf32>
    %467 = arith.addf %465, %466 : vector<2x128xf32>
    %c7_265 = arith.constant 7 : index
    %c0_266 = arith.constant 0 : index
    %c0_267 = arith.constant 0 : index
    %468 = vector.load %arg7[%c7_265, %c0_266, %c0_267] : memref<8x2x128xf32, #tpu.memory_space<vmem>>, vector<1x2x128xf32>
    %469 = vector.shape_cast %468 : vector<1x2x128xf32> to vector<2x128xf32>
    %cst_268 = arith.constant dense<0.000000e+00> : vector<2x128xf32>
    %470 = tpu.matmul %463, %193, %cst_268 {dimension_numbers = #tpu.dot_dimension_numbers<[1], [0], [0], [1], [0, 0, 1, 1], [], []>} : vector<2x32xf32>, vector<32x128xf32>, vector<2x128xf32> -> vector<2x128xf32>
    %471 = arith.addf %469, %470 : vector<2x128xf32>
    %472 = arith.negf %467 : vector<2x128xf32>
    %473 = math.exp %472 : vector<2x128xf32>
    %cst_269 = arith.constant 1.000000e+00 : f32
    %474 = vector.broadcast %cst_269 : f32 to vector<2x128xf32>
    %475 = arith.addf %474, %473 : vector<2x128xf32>
    %476 = arith.divf %474, %475 : vector<2x128xf32>
    %477 = arith.negf %471 : vector<2x128xf32>
    %478 = math.exp %477 : vector<2x128xf32>
    %cst_270 = arith.constant 1.000000e+00 : f32
    %479 = vector.broadcast %cst_270 : f32 to vector<2x128xf32>
    %480 = arith.addf %479, %478 : vector<2x128xf32>
    %481 = arith.divf %479, %480 : vector<2x128xf32>
    %482 = vector.extract_strided_slice %476 {offsets = [0, 32], sizes = [2, 32], strides = [1, 1]} : vector<2x128xf32> to vector<2x32xf32>
    %483 = arith.mulf %482, %450 : vector<2x32xf32>
    %484 = vector.extract_strided_slice %476 {offsets = [0, 0], sizes = [2, 32], strides = [1, 1]} : vector<2x128xf32> to vector<2x32xf32>
    %485 = vector.extract_strided_slice %467 {offsets = [0, 64], sizes = [2, 32], strides = [1, 1]} : vector<2x128xf32> to vector<2x32xf32>
    %486 = math.tanh %485 : vector<2x32xf32>
    %487 = arith.mulf %484, %486 : vector<2x32xf32>
    %488 = arith.addf %483, %487 : vector<2x32xf32>
    %489 = vector.extract_strided_slice %481 {offsets = [0, 32], sizes = [2, 32], strides = [1, 1]} : vector<2x128xf32> to vector<2x32xf32>
    %490 = arith.mulf %489, %457 : vector<2x32xf32>
    %491 = vector.extract_strided_slice %481 {offsets = [0, 0], sizes = [2, 32], strides = [1, 1]} : vector<2x128xf32> to vector<2x32xf32>
    %492 = vector.extract_strided_slice %471 {offsets = [0, 64], sizes = [2, 32], strides = [1, 1]} : vector<2x128xf32> to vector<2x32xf32>
    %493 = math.tanh %492 : vector<2x32xf32>
    %494 = arith.mulf %491, %493 : vector<2x32xf32>
    %495 = arith.addf %490, %494 : vector<2x32xf32>
    %496 = vector.extract_strided_slice %476 {offsets = [0, 96], sizes = [2, 32], strides = [1, 1]} : vector<2x128xf32> to vector<2x32xf32>
    %497 = math.tanh %488 : vector<2x32xf32>
    %498 = arith.mulf %496, %497 : vector<2x32xf32>
    %499 = vector.extract_strided_slice %481 {offsets = [0, 96], sizes = [2, 32], strides = [1, 1]} : vector<2x128xf32> to vector<2x32xf32>
    %500 = math.tanh %495 : vector<2x32xf32>
    %501 = arith.mulf %499, %500 : vector<2x32xf32>
    %c0_271 = arith.constant 0 : index
    %c0_272 = arith.constant 0 : index
    %502 = vector.load %arg5[%c0_271, %c0_272] : memref<2x64xf32, #tpu.memory_space<vmem>>, vector<2x32xf32>
    tpu.vector_store %arg5[%c0_271, %c0_272], %498 {strides = array<i32>} : memref<2x64xf32, #tpu.memory_space<vmem>>, vector<2x32xf32>,
    %c0_273 = arith.constant 0 : index
    %c32 = arith.constant 32 : index
    %503 = vector.load %arg5[%c0_273, %c32] : memref<2x64xf32, #tpu.memory_space<vmem>>, vector<2x32xf32>
    tpu.vector_store %arg5[%c0_273, %c32], %501 {strides = array<i32>} : memref<2x64xf32, #tpu.memory_space<vmem>>, vector<2x32xf32>,
    return
  }
}

</mosaic_0001>

<llo_original>
// kernel: char_bilstm_forward.1
$region0: #{char_bilstm_forward.1}
  #allocation0 [shape = 'u32[]', space=smem, size = 0x4, offset = 0x4, fixed_abs, tag = 'smem constant byte address 0x4 - core index']
  #allocation1 [shape = 'u32[72,128]{1,0:T(1,128)}', space=vmem, size = 0x9000, scoped, tag = 'internal scratch']
  #allocation2 [shape = 'f32[8,2,128]{2,1,0:T(2,128)}', space=vmem, size = 0x2000, scoped, tag = 'scratch operand']
  #allocation3 [shape = 'f32[8,2,128]{2,1,0:T(2,128)}', space=vmem, size = 0x2000, scoped, tag = 'scratch operand']
  %s0 = inlined_call_operand.vmem [shape: s32[2,8], index: 0, kind: input, shape index: {}]
  %s1 = inlined_call_operand.vmem [shape: f32[20,128], index: 1, kind: input, shape index: {}]
  %s2 = inlined_call_operand.vmem [shape: f32[20,128], index: 2, kind: input, shape index: {}]
  %s3 = inlined_call_operand.vmem [shape: f32[32,128], index: 3, kind: input, shape index: {}]
  %s4 = inlined_call_operand.vmem [shape: f32[32,128], index: 4, kind: input, shape index: {}]
  %s5 = inlined_call_operand.hbm [shape: f32[2,64], index: 5, kind: output, shape index: {}]
  %s6 = sld [smem:[#allocation0]]
  $region34: #{char_bilstm_forward.1} parent=0
    _
  %s8 = ssub.s32 1, %s6
  %s9 = scalar_select 0, %s8, %s6
  $region1: #{char_bilstm_forward.1} parent=0
    #allocation4 [shape = 'u8[1024]{0}', space=smem, size = 0x400, scoped, tag = 'input window, operand 0, single buffered']
    #allocation5 [shape = 's32[1]{0}', space=sflag, size = 0x4, scoped, tag = 'scoped memory for char_bilstm_forward.1']
    #allocation6 [shape = 's32[1]{0}', space=sflag, size = 0x4, scoped, tag = 'scoped memory for char_bilstm_forward.1']
    #allocation7 [shape = 'u8[1024]{0}', space=vmem, size = 0x400, scoped, tag = 'output window, operand 0, single buffered']
    %10 = vsyncpa [#allocation6], 0
    %11 = vsyncpa [#allocation5], 0
    // Predicated region
    $region2: #{char_bilstm_forward.1} parent=1 // pred_check
      _
    $region3: #{char_bilstm_forward.1} parent=1 // pred_check_branch
      %13 = sbr.rel (0) target = $region5
    $region4: #{char_bilstm_forward.1} parent=1 // pred_region
      %15 = vsyncadd [#allocation6], 0
      %s17 = sshll.u32 %s0, 4
      %s18 = int_to_ptr.vmem [resolvable:$true] %s17
      %20 = dma.vmem_to_smem %s18, 32, [#allocation4], [#allocation6]
    $region5: #{char_bilstm_forward.1} parent=1 // pred_fallthru
      _
    // Predicated region
    $region6: #{char_bilstm_forward.1} parent=1 // pred_check
      _
    $region7: #{char_bilstm_forward.1} parent=1 // pred_check_branch
      %22 = sbr.rel (0) target = $region9
    $region8: #{char_bilstm_forward.1} parent=1 // pred_region
      _
    $region9: #{char_bilstm_forward.1} parent=1 // pred_fallthru
      _
    // Predicated region
    $region10: #{char_bilstm_forward.1} parent=1 // pred_check
      _
    $region11: #{char_bilstm_forward.1} parent=1 // pred_check_branch
      %24 = sbr.rel (0) target = $region13
    $region12: #{char_bilstm_forward.1} parent=1 // pred_region
      _
    $region13: #{char_bilstm_forward.1} parent=1 // pred_fallthru
      _
    // Predicated region
    $region14: #{char_bilstm_forward.1} parent=1 // pred_check
      _
    $region15: #{char_bilstm_forward.1} parent=1 // pred_check_branch
      %26 = sbr.rel (0) target = $region17
    $region16: #{char_bilstm_forward.1} parent=1 // pred_region
      _
    $region17: #{char_bilstm_forward.1} parent=1 // pred_fallthru
      _
    // Predicated region
    $region18: #{char_bilstm_forward.1} parent=1 // pred_check
      _
    $region19: #{char_bilstm_forward.1} parent=1 // pred_check_branch
      %28 = sbr.rel (0) target = $region21
    $region20: #{char_bilstm_forward.1} parent=1 // pred_region
      _
    $region21: #{char_bilstm_forward.1} parent=1 // pred_fallthru
      _
    // Predicated region
    $region22: #{char_bilstm_forward.1} parent=1 // pred_check
      _
    $region23: #{char_bilstm_forward.1} parent=1 // pred_check_branch
      %30 = sbr.rel (0) target = $region25
    $region24: #{char_bilstm_forward.1} parent=1 // pred_region
      %32 = dma.done [#allocation6], 32
    $region25: #{char_bilstm_forward.1} parent=1 // pred_fallthru
      _
    %33 = sfence
    %s34 = sld [smem:[#allocation4]]
    %s35 = sld [smem:[#allocation4 + $0x7]]
    %s36 = scalar_lea.vmem %s1, %s34
    %v37 = vld [vmem:[%s36] sm:$0x1]
    %38 = vst [vmem:[#allocation2] sm:$0x1] %v37
    %s39 = scalar_lea.vmem %s2, %s35
    %v40 = vld [vmem:[%s39] sm:$0x1]
    %41 = vst [vmem:[#allocation3] sm:$0x1] %v40
    %s42 = sld [smem:[#allocation4 + $0x80]]
    %s43 = sld [smem:[#allocation4 + $0x87]]
    %s44 = scalar_lea.vmem %s1, %s42
    %v45 = vld [vmem:[%s44] sm:$0x1]
    %46 = vst [vmem:[#allocation2 + $0x1] sm:$0x1] %v45
    %s47 = scalar_lea.vmem %s2, %s43
    %v48 = vld [vmem:[%s47] sm:$0x1]
    %49 = vst [vmem:[#allocation3 + $0x1] sm:$0x1] %v48
    %s50 = sld [smem:[#allocation4 + $0x1]]
    %s51 = sld [smem:[#allocation4 + $0x6]]
    %s52 = scalar_lea.vmem %s1, %s50
    %v53 = vld [vmem:[%s52] sm:$0x1]
    %s54 = scalar_lea.vmem [#allocation2], 2
    %55 = vst [vmem:[%s54] sm:$0x1] %v53
    %s56 = scalar_lea.vmem %s2, %s51
    %v57 = vld [vmem:[%s56] sm:$0x1]
    %s58 = scalar_lea.vmem [#allocation3], 2
    %59 = vst [vmem:[%s58] sm:$0x1] %v57
    %s60 = sld [smem:[#allocation4 + $0x81]]
    %s61 = sld [smem:[#allocation4 + $0x86]]
    %s62 = scalar_lea.vmem %s1, %s60
    %v63 = vld [vmem:[%s62] sm:$0x1]
    %64 = vst [vmem:[%s54 + $0x1] sm:$0x1] %v63
    %s65 = scalar_lea.vmem %s2, %s61
    %v66 = vld [vmem:[%s65] sm:$0x1]
    %67 = vst [vmem:[%s58 + $0x1] sm:$0x1] %v66
    %s68 = sld [smem:[#allocation4 + $0x2]]
    %s69 = sld [smem:[#allocation4 + $0x5]]
    %s70 = scalar_lea.vmem %s1, %s68
    %v71 = vld [vmem:[%s70] sm:$0x1]
    %s72 = scalar_lea.vmem [#allocation2], 4
    %73 = vst [vmem:[%s72] sm:$0x1] %v71
    %s74 = scalar_lea.vmem %s2, %s69
    %v75 = vld [vmem:[%s74] sm:$0x1]
    %s76 = scalar_lea.vmem [#allocation3], 4
    %77 = vst [vmem:[%s76] sm:$0x1] %v75
    %s78 = sld [smem:[#allocation4 + $0x82]]
    %s79 = sld [smem:[#allocation4 + $0x85]]
    %s80 = scalar_lea.vmem %s1, %s78
    %v81 = vld [vmem:[%s80] sm:$0x1]
    %82 = vst [vmem:[%s72 + $0x1] sm:$0x1] %v81
    %s83 = scalar_lea.vmem %s2, %s79
    %v84 = vld [vmem:[%s83] sm:$0x1]
    %85 = vst [vmem:[%s76 + $0x1] sm:$0x1] %v84
    %s86 = sld [smem:[#allocation4 + $0x3]]
    %s87 = sld [smem:[#allocation4 + $0x4]]
    %s88 = scalar_lea.vmem %s1, %s86
    %v89 = vld [vmem:[%s88] sm:$0x1]
    %s90 = scalar_lea.vmem [#allocation2], 6
    %91 = vst [vmem:[%s90] sm:$0x1] %v89
    %s92 = scalar_lea.vmem %s2, %s87
    %v93 = vld [vmem:[%s92] sm:$0x1]
    %s94 = scalar_lea.vmem [#allocation3], 6
    %95 = vst [vmem:[%s94] sm:$0x1] %v93
    %s96 = sld [smem:[#allocation4 + $0x83]]
    %s97 = sld [smem:[#allocation4 + $0x84]]
    %s98 = scalar_lea.vmem %s1, %s96
    %v99 = vld [vmem:[%s98] sm:$0x1]
    %100 = vst [vmem:[%s90 + $0x1] sm:$0x1] %v99
    %s101 = scalar_lea.vmem %s2, %s97
    %v102 = vld [vmem:[%s101] sm:$0x1]
    %103 = vst [vmem:[%s94 + $0x1] sm:$0x1] %v102
    %s104 = sld [smem:[#allocation4 + $0x4]]
    %s105 = sld [smem:[#allocation4 + $0x3]]
    %s106 = scalar_lea.vmem %s1, %s104
    %v107 = vld [vmem:[%s106] sm:$0x1]
    %s108 = scalar_lea.vmem [#allocation2], 8
    %109 = vst [vmem:[%s108] sm:$0x1] %v107
    %s110 = scalar_lea.vmem %s2, %s105
    %v111 = vld [vmem:[%s110] sm:$0x1]
    %s112 = scalar_lea.vmem [#allocation3], 8
    %113 = vst [vmem:[%s112] sm:$0x1] %v111
    %s114 = sld [smem:[#allocation4 + $0x84]]
    %s115 = sld [smem:[#allocation4 + $0x83]]
    %s116 = scalar_lea.vmem %s1, %s114
    %v117 = vld [vmem:[%s116] sm:$0x1]
    %118 = vst [vmem:[%s108 + $0x1] sm:$0x1] %v117
    %s119 = scalar_lea.vmem %s2, %s115
    %v120 = vld [vmem:[%s119] sm:$0x1]
    %121 = vst [vmem:[%s112 + $0x1] sm:$0x1] %v120
    %s122 = sld [smem:[#allocation4 + $0x5]]
    %s123 = sld [smem:[#allocation4 + $0x2]]
    %s124 = scalar_lea.vmem %s1, %s122
    %v125 = vld [vmem:[%s124] sm:$0x1]
    %s126 = scalar_lea.vmem [#allocation2], 10
    %127 = vst [vmem:[%s126] sm:$0x1] %v125
    %s128 = scalar_lea.vmem %s2, %s123
    %v129 = vld [vmem:[%s128] sm:$0x1]
    %s130 = scalar_lea.vmem [#allocation3], 10
    %131 = vst [vmem:[%s130] sm:$0x1] %v129
    %s132 = sld [smem:[#allocation4 + $0x85]]
    %s133 = sld [smem:[#allocation4 + $0x82]]
    %s134 = scalar_lea.vmem %s1, %s132
    %v135 = vld [vmem:[%s134] sm:$0x1]
    %136 = vst [vmem:[%s126 + $0x1] sm:$0x1] %v135
    %s137 = scalar_lea.vmem %s2, %s133
    %v138 = vld [vmem:[%s137] sm:$0x1]
    %139 = vst [vmem:[%s130 + $0x1] sm:$0x1] %v138
    %s140 = sld [smem:[#allocation4 + $0x6]]
    %s141 = sld [smem:[#allocation4 + $0x1]]
    %s142 = scalar_lea.vmem %s1, %s140
    %v143 = vld [vmem:[%s142] sm:$0x1]
    %s144 = scalar_lea.vmem [#allocation2], 12
    %145 = vst [vmem:[%s144] sm:$0x1] %v143
    %s146 = scalar_lea.vmem %s2, %s141
    %v147 = vld [vmem:[%s146] sm:$0x1]
    %s148 = scalar_lea.vmem [#allocation3], 12
    %149 = vst [vmem:[%s148] sm:$0x1] %v147
    %s150 = sld [smem:[#allocation4 + $0x86]]
    %s151 = sld [smem:[#allocation4 + $0x81]]
    %s152 = scalar_lea.vmem %s1, %s150
    %v153 = vld [vmem:[%s152] sm:$0x1]
    %154 = vst [vmem:[%s144 + $0x1] sm:$0x1] %v153
    %s155 = scalar_lea.vmem %s2, %s151
    %v156 = vld [vmem:[%s155] sm:$0x1]
    %157 = vst [vmem:[%s148 + $0x1] sm:$0x1] %v156
    %s158 = sld [smem:[#allocation4 + $0x7]]
    %s159 = sld [smem:[#allocation4]]
    %s160 = scalar_lea.vmem %s1, %s158
    %v161 = vld [vmem:[%s160] sm:$0x1]
    %s162 = scalar_lea.vmem [#allocation2], 14
    %163 = vst [vmem:[%s162] sm:$0x1] %v161
    %s164 = scalar_lea.vmem %s2, %s159
    %v165 = vld [vmem:[%s164] sm:$0x1]
    %s166 = scalar_lea.vmem [#allocation3], 14
    %167 = vst [vmem:[%s166] sm:$0x1] %v165
    %s168 = sld [smem:[#allocation4 + $0x87]]
    %s169 = sld [smem:[#allocation4 + $0x80]]
    %s170 = scalar_lea.vmem %s1, %s168
    %v171 = vld [vmem:[%s170] sm:$0x1]
    %172 = vst [vmem:[%s162 + $0x1] sm:$0x1] %v171
    %s173 = scalar_lea.vmem %s2, %s169
    %v174 = vld [vmem:[%s173] sm:$0x1]
    %175 = vst [vmem:[%s166 + $0x1] sm:$0x1] %v174
    %v176 = vld [vmem:[%s3] sm:$0xff]
    %v177 = vld [vmem:[%s3 + $0x8] sm:$0xff]
    %v178 = vld [vmem:[%s3 + $0x10] sm:$0xff]
    %v179 = vld [vmem:[%s3 + $0x18] sm:$0xff]
    %v180 = vld [vmem:[%s4] sm:$0xff]
    %v181 = vld [vmem:[%s4 + $0x8] sm:$0xff]
    %v182 = vld [vmem:[%s4 + $0x10] sm:$0xff]
    %v183 = vld [vmem:[%s4 + $0x18] sm:$0xff]
    %v184 = vld [vmem:[#allocation2] sm:$0x3]
    %vm185 = vcmask 261120
    %v187 = vsel %vm185, 0.0, 0
    %189 = vmatpush.msra.mxu0 0.0
    %190 = vmatpush.msra.mxu0 0.0
    %191 = vmatpush.msra.mxu0 0.0
    %192 = vmatpush.msra.mxu0 0.0
    %193 = vmatpush.msra.mxu0 0.0
    %194 = vmatpush.msra.mxu0 0.0
    %195 = vmatpush.msra.mxu0 0.0
    %196 = vmatpush.msra.mxu0 0.0
    %197 = vmatpush.msra.mxu0 0.0
    %198 = vmatpush.msra.mxu0 0.0
    %199 = vmatpush.msra.mxu0 0.0
    %200 = vmatpush.msra.mxu0 0.0
    %201 = vmatpush.msra.mxu0 %v179
    %202 = vmatpush.msra.mxu0 %v178
    %203 = vmatpush.msra.mxu0 %v177
    %204 = vmatpush.msra.mxu0 %v176
    %205 = vmatmul.f32.gmra.mxu0 %v187
    %v206 = vpop.f32.mrf.mxu0
    %v207 = vadd.f32 0.0, %v206
    %208 = vdwg.mxu0
    %v209 = vadd.f32 %v184, %v207
    %v210 = vld [vmem:[#allocation3] sm:$0x3]
    %211 = vmatpush.msra.mxu0 0.0
    %212 = vmatpush.msra.mxu0 0.0
    %213 = vmatpush.msra.mxu0 0.0
    %214 = vmatpush.msra.mxu0 0.0
    %215 = vmatpush.msra.mxu0 0.0
    %216 = vmatpush.msra.mxu0 0.0
    %217 = vmatpush.msra.mxu0 0.0
    %218 = vmatpush.msra.mxu0 0.0
    %219 = vmatpush.msra.mxu0 0.0
    %220 = vmatpush.msra.mxu0 0.0
    %221 = vmatpush.msra.mxu0 0.0
    %222 = vmatpush.msra.mxu0 0.0
    %223 = vmatpush.msra.mxu0 %v183
    %224 = vmatpush.msra.mxu0 %v182
    %225 = vmatpush.msra.mxu0 %v181
    %226 = vmatpush.msra.mxu0 %v180
    %227 = vmatmul.f32.gmra.mxu0 %v187
    %v228 = vpop.f32.mrf.mxu0
    %v229 = vadd.f32 0.0, %v228
    %230 = vdwg.mxu0
    %v231 = vadd.f32 %v210, %v229
    %v232 = vxor.u32 %v209, 2147483648
    %v233 = vmul.f32 %v232, 1.442695
    %v234 = vpow.pop %v233
    %v235 = vadd.f32 %v234, 1.0
    %v236 = vrcp.pop %v235
    %v237 = vmul.f32 %v235, %v236
    %v238 = vsub.f32 1.0, %v237
    %v239 = vmul.f32 %v236, %v238
    %v240 = vadd.f32 %v236, %v239
    %vm241 = vweird.f32 %v235
    %vm242 = vweird.f32 %v236
    %vm243 = vmor %vm241, %vm242
    %v244 = vsel %vm243, %v236, %v240
    %v245 = vand.u32 2147483647, %v235
    %vm246 = vcmp.eq.f32.partialorder %v245, 8.507059e+37
    %v247 = vand.u32 %v235, 2147483648
    %v248 = vor.u32 1.1754944e-38, %v247
    %v249 = vsel %vm246, %v248, %v244
    %v250 = vmul.f32 1.0, %v249
    %v251 = vxor.u32 %v231, 2147483648
    %v252 = vmul.f32 %v251, 1.442695
    %v253 = vpow.pop %v252
    %v254 = vadd.f32 %v253, 1.0
    %v255 = vrcp.pop %v254
    %v256 = vmul.f32 %v254, %v255
    %v257 = vsub.f32 1.0, %v256
    %v258 = vmul.f32 %v255, %v257
    %v259 = vadd.f32 %v255, %v258
    %vm260 = vweird.f32 %v254
    %vm261 = vweird.f32 %v255
    %vm262 = vmor %vm260, %vm261
    %v263 = vsel %vm262, %v255, %v259
    %v264 = vand.u32 2147483647, %v254
    %vm265 = vcmp.eq.f32.partialorder %v264, 8.507059e+37
    %v266 = vand.u32 %v254, 2147483648
    %v267 = vor.u32 1.1754944e-38, %v266
    %v268 = vsel %vm265, %v267, %v263
    %v269 = vmul.f32 1.0, %v268
    %v270 = vmul.f32 %v250, 0.0
    %v271 = vtanh.pop %v209
    %273 = vrot.lane.b32.xlu0 %v271, 64
    %v274 = vpop.permute.xlu0 %273
    %v276 = vmul.f32 %v250, %v274
    %278 = vrot.lane.b32.xlu0 %v276, 32
    %v279 = vpop.permute.xlu0 %278
    %v281 = vadd.f32 %v270, %v279
    %v282 = vmul.f32 %v269, 0.0
    %v283 = vtanh.pop %v231
    %285 = vrot.lane.b32.xlu0 %v283, 64
    %v286 = vpop.permute.xlu0 %285
    %v288 = vmul.f32 %v269, %v286
    %290 = vrot.lane.b32.xlu0 %v288, 32
    %v291 = vpop.permute.xlu0 %290
    %v293 = vadd.f32 %v282, %v291
    %v294 = vtanh.pop %v281
    %296 = vrot.lane.b32.xlu0 %v294, 64
    %v297 = vpop.permute.xlu0 %296
    %v299 = vmul.f32 %v250, %v297
    %v300 = vtanh.pop %v293
    %302 = vrot.lane.b32.xlu0 %v300, 64
    %v303 = vpop.permute.xlu0 %302
    %v305 = vmul.f32 %v269, %v303
    %v306 = vld [vmem:[%s54] sm:$0x3]
    %308 = vrot.lane.b32.xlu0 %v299, 32
    %v309 = vpop.permute.xlu0 %308
    %v310 = vsel %vm185, %v309, 0
    %312 = vmatpush.msra.mxu0 0.0
    %313 = vmatpush.msra.mxu0 0.0
    %314 = vmatpush.msra.mxu0 0.0
    %315 = vmatpush.msra.mxu0 0.0
    %316 = vmatpush.msra.mxu0 0.0
    %317 = vmatpush.msra.mxu0 0.0
    %318 = vmatpush.msra.mxu0 0.0
    %319 = vmatpush.msra.mxu0 0.0
    %320 = vmatpush.msra.mxu0 0.0
    %321 = vmatpush.msra.mxu0 0.0
    %322 = vmatpush.msra.mxu0 0.0
    %323 = vmatpush.msra.mxu0 0.0
    %324 = vmatpush.msra.mxu0 %v179
    %325 = vmatpush.msra.mxu0 %v178
    %326 = vmatpush.msra.mxu0 %v177
    %327 = vmatpush.msra.mxu0 %v176
    %328 = vmatmul.f32.gmra.mxu0 %v310
    %v329 = vpop.f32.mrf.mxu0
    %v330 = vadd.f32 0.0, %v329
    %331 = vdwg.mxu0
    %v332 = vadd.f32 %v306, %v330
    %v333 = vld [vmem:[%s58] sm:$0x3]
    %335 = vrot.lane.b32.xlu0 %v305, 32
    %v336 = vpop.permute.xlu0 %335
    %v337 = vsel %vm185, %v336, 0
    %339 = vmatpush.msra.mxu0 0.0
    %340 = vmatpush.msra.mxu0 0.0
    %341 = vmatpush.msra.mxu0 0.0
    %342 = vmatpush.msra.mxu0 0.0
    %343 = vmatpush.msra.mxu0 0.0
    %344 = vmatpush.msra.mxu0 0.0
    %345 = vmatpush.msra.mxu0 0.0
    %346 = vmatpush.msra.mxu0 0.0
    %347 = vmatpush.msra.mxu0 0.0
    %348 = vmatpush.msra.mxu0 0.0
    %349 = vmatpush.msra.mxu0 0.0
    %350 = vmatpush.msra.mxu0 0.0
    %351 = vmatpush.msra.mxu0 %v183
    %352 = vmatpush.msra.mxu0 %v182
    %353 = vmatpush.msra.mxu0 %v181
    %354 = vmatpush.msra.mxu0 %v180
    %355 = vmatmul.f32.gmra.mxu0 %v337
    %v356 = vpop.f32.mrf.mxu0
    %v357 = vadd.f32 0.0, %v356
    %358 = vdwg.mxu0
    %v359 = vadd.f32 %v333, %v357
    %v360 = vxor.u32 %v332, 2147483648
    %v361 = vmul.f32 %v360, 1.442695
    %v362 = vpow.pop %v361
    %v363 = vadd.f32 %v362, 1.0
    %v364 = vrcp.pop %v363
    %v365 = vmul.f32 %v363, %v364
    %v366 = vsub.f32 1.0, %v365
    %v367 = vmul.f32 %v364, %v366
    %v368 = vadd.f32 %v364, %v367
    %vm369 = vweird.f32 %v363
    %vm370 = vweird.f32 %v364
    %vm371 = vmor %vm369, %vm370
    %v372 = vsel %vm371, %v364, %v368
    %v373 = vand.u32 2147483647, %v363
    %vm374 = vcmp.eq.f32.partialorder %v373, 8.507059e+37
    %v375 = vand.u32 %v363, 2147483648
    %v376 = vor.u32 1.1754944e-38, %v375
    %v377 = vsel %vm374, %v376, %v372
    %v378 = vmul.f32 1.0, %v377
    %v379 = vxor.u32 %v359, 2147483648
    %v380 = vmul.f32 %v379, 1.442695
    %v381 = vpow.pop %v380
    %v382 = vadd.f32 %v381, 1.0
    %v383 = vrcp.pop %v382
    %v384 = vmul.f32 %v382, %v383
    %v385 = vsub.f32 1.0, %v384
    %v386 = vmul.f32 %v383, %v385
    %v387 = vadd.f32 %v383, %v386
    %vm388 = vweird.f32 %v382
    %vm389 = vweird.f32 %v383
    %vm390 = vmor %vm388, %vm389
    %v391 = vsel %vm390, %v383, %v387
    %v392 = vand.u32 2147483647, %v382
    %vm393 = vcmp.eq.f32.partialorder %v392, 8.507059e+37
    %v394 = vand.u32 %v382, 2147483648
    %v395 = vor.u32 1.1754944e-38, %v394
    %v396 = vsel %vm393, %v395, %v391
    %v397 = vmul.f32 1.0, %v396
    %v398 = vmul.f32 %v378, %v281
    %v399 = vtanh.pop %v332
    %401 = vrot.lane.b32.xlu0 %v399, 64
    %v402 = vpop.permute.xlu0 %401
    %v404 = vmul.f32 %v378, %v402
    %406 = vrot.lane.b32.xlu0 %v404, 32
    %v407 = vpop.permute.xlu0 %406
    %v409 = vadd.f32 %v398, %v407
    %v410 = vmul.f32 %v397, %v293
    %v411 = vtanh.pop %v359
    %413 = vrot.lane.b32.xlu0 %v411, 64
    %v414 = vpop.permute.xlu0 %413
    %v416 = vmul.f32 %v397, %v414
    %418 = vrot.lane.b32.xlu0 %v416, 32
    %v419 = vpop.permute.xlu0 %418
    %v421 = vadd.f32 %v410, %v419
    %v422 = vtanh.pop %v409
    %424 = vrot.lane.b32.xlu0 %v422, 64
    %v425 = vpop.permute.xlu0 %424
    %v427 = vmul.f32 %v378, %v425
    %v428 = vtanh.pop %v421
    %430 = vrot.lane.b32.xlu0 %v428, 64
    %v431 = vpop.permute.xlu0 %430
    %v433 = vmul.f32 %v397, %v431
    %v434 = vld [vmem:[%s72] sm:$0x3]
    %436 = vrot.lane.b32.xlu0 %v427, 32
    %v437 = vpop.permute.xlu0 %436
    %v438 = vsel %vm185, %v437, 0
    %440 = vmatpush.msra.mxu0 0.0
    %441 = vmatpush.msra.mxu0 0.0
    %442 = vmatpush.msra.mxu0 0.0
    %443 = vmatpush.msra.mxu0 0.0
    %444 = vmatpush.msra.mxu0 0.0
    %445 = vmatpush.msra.mxu0 0.0
    %446 = vmatpush.msra.mxu0 0.0
    %447 = vmatpush.msra.mxu0 0.0
    %448 = vmatpush.msra.mxu0 0.0
    %449 = vmatpush.msra.mxu0 0.0
    %450 = vmatpush.msra.mxu0 0.0
    %451 = vmatpush.msra.mxu0 0.0
    %452 = vmatpush.msra.mxu0 %v179
    %453 = vmatpush.msra.mxu0 %v178
    %454 = vmatpush.msra.mxu0 %v177
    %455 = vmatpush.msra.mxu0 %v176
    %456 = vmatmul.f32.gmra.mxu0 %v438
    %v457 = vpop.f32.mrf.mxu0
    %v458 = vadd.f32 0.0, %v457
    %459 = vdwg.mxu0
    %v460 = vadd.f32 %v434, %v458
    %v461 = vld [vmem:[%s76] sm:$0x3]
    %463 = vrot.lane.b32.xlu0 %v433, 32
    %v464 = vpop.permute.xlu0 %463
    %v465 = vsel %vm185, %v464, 0
    %467 = vmatpush.msra.mxu0 0.0
    %468 = vmatpush.msra.mxu0 0.0
    %469 = vmatpush.msra.mxu0 0.0
    %470 = vmatpush.msra.mxu0 0.0
    %471 = vmatpush.msra.mxu0 0.0
    %472 = vmatpush.msra.mxu0 0.0
    %473 = vmatpush.msra.mxu0 0.0
    %474 = vmatpush.msra.mxu0 0.0
    %475 = vmatpush.msra.mxu0 0.0
    %476 = vmatpush.msra.mxu0 0.0
    %477 = vmatpush.msra.mxu0 0.0
    %478 = vmatpush.msra.mxu0 0.0
    %479 = vmatpush.msra.mxu0 %v183
    %480 = vmatpush.msra.mxu0 %v182
    %481 = vmatpush.msra.mxu0 %v181
    %482 = vmatpush.msra.mxu0 %v180
    %483 = vmatmul.f32.gmra.mxu0 %v465
    %v484 = vpop.f32.mrf.mxu0
    %v485 = vadd.f32 0.0, %v484
    %486 = vdwg.mxu0
    %v487 = vadd.f32 %v461, %v485
    %v488 = vxor.u32 %v460, 2147483648
    %v489 = vmul.f32 %v488, 1.442695
    %v490 = vpow.pop %v489
    %v491 = vadd.f32 %v490, 1.0
    %v492 = vrcp.pop %v491
    %v493 = vmul.f32 %v491, %v492
    %v494 = vsub.f32 1.0, %v493
    %v495 = vmul.f32 %v492, %v494
    %v496 = vadd.f32 %v492, %v495
    %vm497 = vweird.f32 %v491
    %vm498 = vweird.f32 %v492
    %vm499 = vmor %vm497, %vm498
    %v500 = vsel %vm499, %v492, %v496
    %v501 = vand.u32 2147483647, %v491
    %vm502 = vcmp.eq.f32.partialorder %v501, 8.507059e+37
    %v503 = vand.u32 %v491, 2147483648
    %v504 = vor.u32 1.1754944e-38, %v503
    %v505 = vsel %vm502, %v504, %v500
    %v506 = vmul.f32 1.0, %v505
    %v507 = vxor.u32 %v487, 2147483648
    %v508 = vmul.f32 %v507, 1.442695
    %v509 = vpow.pop %v508
    %v510 = vadd.f32 %v509, 1.0
    %v511 = vrcp.pop %v510
    %v512 = vmul.f32 %v510, %v511
    %v513 = vsub.f32 1.0, %v512
    %v514 = vmul.f32 %v511, %v513
    %v515 = vadd.f32 %v511, %v514
    %vm516 = vweird.f32 %v510
    %vm517 = vweird.f32 %v511
    %vm518 = vmor %vm516, %vm517
    %v519 = vsel %vm518, %v511, %v515
    %v520 = vand.u32 2147483647, %v510
    %vm521 = vcmp.eq.f32.partialorder %v520, 8.507059e+37
    %v522 = vand.u32 %v510, 2147483648
    %v523 = vor.u32 1.1754944e-38, %v522
    %v524 = vsel %vm521, %v523, %v519
    %v525 = vmul.f32 1.0, %v524
    %v526 = vmul.f32 %v506, %v409
    %v527 = vtanh.pop %v460
    %529 = vrot.lane.b32.xlu0 %v527, 64
    %v530 = vpop.permute.xlu0 %529
    %v532 = vmul.f32 %v506, %v530
    %534 = vrot.lane.b32.xlu0 %v532, 32
    %v535 = vpop.permute.xlu0 %534
    %v537 = vadd.f32 %v526, %v535
    %v538 = vmul.f32 %v525, %v421
    %v539 = vtanh.pop %v487
    %541 = vrot.lane.b32.xlu0 %v539, 64
    %v542 = vpop.permute.xlu0 %541
    %v544 = vmul.f32 %v525, %v542
    %546 = vrot.lane.b32.xlu0 %v544, 32
    %v547 = vpop.permute.xlu0 %546
    %v549 = vadd.f32 %v538, %v547
    %v550 = vtanh.pop %v537
    %552 = vrot.lane.b32.xlu0 %v550, 64
    %v553 = vpop.permute.xlu0 %552
    %v555 = vmul.f32 %v506, %v553
    %v556 = vtanh.pop %v549
    %558 = vrot.lane.b32.xlu0 %v556, 64
    %v559 = vpop.permute.xlu0 %558
    %v561 = vmul.f32 %v525, %v559
    %v562 = vld [vmem:[%s90] sm:$0x3]
    %564 = vrot.lane.b32.xlu0 %v555, 32
    %v565 = vpop.permute.xlu0 %564
    %v566 = vsel %vm185, %v565, 0
    %568 = vmatpush.msra.mxu0 0.0
    %569 = vmatpush.msra.mxu0 0.0
    %570 = vmatpush.msra.mxu0 0.0
    %571 = vmatpush.msra.mxu0 0.0
    %572 = vmatpush.msra.mxu0 0.0
    %573 = vmatpush.msra.mxu0 0.0
    %574 = vmatpush.msra.mxu0 0.0
    %575 = vmatpush.msra.mxu0 0.0
    %576 = vmatpush.msra.mxu0 0.0
    %577 = vmatpush.msra.mxu0 0.0
    %578 = vmatpush.msra.mxu0 0.0
    %579 = vmatpush.msra.mxu0 0.0
    %580 = vmatpush.msra.mxu0 %v179
    %581 = vmatpush.msra.mxu0 %v178
    %582 = vmatpush.msra.mxu0 %v177
    %583 = vmatpush.msra.mxu0 %v176
    %584 = vmatmul.f32.gmra.mxu0 %v566
    %v585 = vpop.f32.mrf.mxu0
    %v586 = vadd.f32 0.0, %v585
    %587 = vdwg.mxu0
    %v588 = vadd.f32 %v562, %v586
    %v589 = vld [vmem:[%s94] sm:$0x3]
    %591 = vrot.lane.b32.xlu0 %v561, 32
    %v592 = vpop.permute.xlu0 %591
    %v593 = vsel %vm185, %v592, 0
    %595 = vmatpush.msra.mxu0 0.0
    %596 = vmatpush.msra.mxu0 0.0
    %597 = vmatpush.msra.mxu0 0.0
    %598 = vmatpush.msra.mxu0 0.0
    %599 = vmatpush.msra.mxu0 0.0
    %600 = vmatpush.msra.mxu0 0.0
    %601 = vmatpush.msra.mxu0 0.0
    %602 = vmatpush.msra.mxu0 0.0
    %603 = vmatpush.msra.mxu0 0.0
    %604 = vmatpush.msra.mxu0 0.0
    %605 = vmatpush.msra.mxu0 0.0
    %606 = vmatpush.msra.mxu0 0.0
    %607 = vmatpush.msra.mxu0 %v183
    %608 = vmatpush.msra.mxu0 %v182
    %609 = vmatpush.msra.mxu0 %v181
    %610 = vmatpush.msra.mxu0 %v180
    %611 = vmatmul.f32.gmra.mxu0 %v593
    %v612 = vpop.f32.mrf.mxu0
    %v613 = vadd.f32 0.0, %v612
    %614 = vdwg.mxu0
    %v615 = vadd.f32 %v589, %v613
    %v616 = vxor.u32 %v588, 2147483648
    %v617 = vmul.f32 %v616, 1.442695
    %v618 = vpow.pop %v617
    %v619 = vadd.f32 %v618, 1.0
    %v620 = vrcp.pop %v619
    %v621 = vmul.f32 %v619, %v620
    %v622 = vsub.f32 1.0, %v621
    %v623 = vmul.f32 %v620, %v622
    %v624 = vadd.f32 %v620, %v623
    %vm625 = vweird.f32 %v619
    %vm626 = vweird.f32 %v620
    %vm627 = vmor %vm625, %vm626
    %v628 = vsel %vm627, %v620, %v624
    %v629 = vand.u32 2147483647, %v619
    %vm630 = vcmp.eq.f32.partialorder %v629, 8.507059e+37
    %v631 = vand.u32 %v619, 2147483648
    %v632 = vor.u32 1.1754944e-38, %v631
    %v633 = vsel %vm630, %v632, %v628
    %v634 = vmul.f32 1.0, %v633
    %v635 = vxor.u32 %v615, 2147483648
    %v636 = vmul.f32 %v635, 1.442695
    %v637 = vpow.pop %v636
    %v638 = vadd.f32 %v637, 1.0
    %v639 = vrcp.pop %v638
    %v640 = vmul.f32 %v638, %v639
    %v641 = vsub.f32 1.0, %v640
    %v642 = vmul.f32 %v639, %v641
    %v643 = vadd.f32 %v639, %v642
    %vm644 = vweird.f32 %v638
    %vm645 = vweird.f32 %v639
    %vm646 = vmor %vm644, %vm645
    %v647 = vsel %vm646, %v639, %v643
    %v648 = vand.u32 2147483647, %v638
    %vm649 = vcmp.eq.f32.partialorder %v648, 8.507059e+37
    %v650 = vand.u32 %v638, 2147483648
    %v651 = vor.u32 1.1754944e-38, %v650
    %v652 = vsel %vm649, %v651, %v647
    %v653 = vmul.f32 1.0, %v652
    %v654 = vmul.f32 %v634, %v537
    %v655 = vtanh.pop %v588
    %657 = vrot.lane.b32.xlu0 %v655, 64
    %v658 = vpop.permute.xlu0 %657
    %v660 = vmul.f32 %v634, %v658
    %662 = vrot.lane.b32.xlu0 %v660, 32
    %v663 = vpop.permute.xlu0 %662
    %v665 = vadd.f32 %v654, %v663
    %v666 = vmul.f32 %v653, %v549
    %v667 = vtanh.pop %v615
    %669 = vrot.lane.b32.xlu0 %v667, 64
    %v670 = vpop.permute.xlu0 %669
    %v672 = vmul.f32 %v653, %v670
    %674 = vrot.lane.b32.xlu0 %v672, 32
    %v675 = vpop.permute.xlu0 %674
    %v677 = vadd.f32 %v666, %v675
    %v678 = vtanh.pop %v665
    %680 = vrot.lane.b32.xlu0 %v678, 64
    %v681 = vpop.permute.xlu0 %680
    %v683 = vmul.f32 %v634, %v681
    %v684 = vtanh.pop %v677
    %686 = vrot.lane.b32.xlu0 %v684, 64
    %v687 = vpop.permute.xlu0 %686
    %v689 = vmul.f32 %v653, %v687
    %v690 = vld [vmem:[%s108] sm:$0x3]
    %692 = vrot.lane.b32.xlu0 %v683, 32
    %v693 = vpop.permute.xlu0 %692
    %v694 = vsel %vm185, %v693, 0
    %696 = vmatpush.msra.mxu0 0.0
    %697 = vmatpush.msra.mxu0 0.0
    %698 = vmatpush.msra.mxu0 0.0
    %699 = vmatpush.msra.mxu0 0.0
    %700 = vmatpush.msra.mxu0 0.0
    %701 = vmatpush.msra.mxu0 0.0
    %702 = vmatpush.msra.mxu0 0.0
    %703 = vmatpush.msra.mxu0 0.0
    %704 = vmatpush.msra.mxu0 0.0
    %705 = vmatpush.msra.mxu0 0.0
    %706 = vmatpush.msra.mxu0 0.0
    %707 = vmatpush.msra.mxu0 0.0
    %708 = vmatpush.msra.mxu0 %v179
    %709 = vmatpush.msra.mxu0 %v178
    %710 = vmatpush.msra.mxu0 %v177
    %711 = vmatpush.msra.mxu0 %v176
    %712 = vmatmul.f32.gmra.mxu0 %v694
    %v713 = vpop.f32.mrf.mxu0
    %v714 = vadd.f32 0.0, %v713
    %715 = vdwg.mxu0
    %v716 = vadd.f32 %v690, %v714
    %v717 = vld [vmem:[%s112] sm:$0x3]
    %719 = vrot.lane.b32.xlu0 %v689, 32
    %v720 = vpop.permute.xlu0 %719
    %v721 = vsel %vm185, %v720, 0
    %723 = vmatpush.msra.mxu0 0.0
    %724 = vmatpush.msra.mxu0 0.0
    %725 = vmatpush.msra.mxu0 0.0
    %726 = vmatpush.msra.mxu0 0.0
    %727 = vmatpush.msra.mxu0 0.0
    %728 = vmatpush.msra.mxu0 0.0
    %729 = vmatpush.msra.mxu0 0.0
    %730 = vmatpush.msra.mxu0 0.0
    %731 = vmatpush.msra.mxu0 0.0
    %732 = vmatpush.msra.mxu0 0.0
    %733 = vmatpush.msra.mxu0 0.0
    %734 = vmatpush.msra.mxu0 0.0
    %735 = vmatpush.msra.mxu0 %v183
    %736 = vmatpush.msra.mxu0 %v182
    %737 = vmatpush.msra.mxu0 %v181
    %738 = vmatpush.msra.mxu0 %v180
    %739 = vmatmul.f32.gmra.mxu0 %v721
    %v740 = vpop.f32.mrf.mxu0
    %v741 = vadd.f32 0.0, %v740
    %742 = vdwg.mxu0
    %v743 = vadd.f32 %v717, %v741
    %v744 = vxor.u32 %v716, 2147483648
    %v745 = vmul.f32 %v744, 1.442695
    %v746 = vpow.pop %v745
    %v747 = vadd.f32 %v746, 1.0
    %v748 = vrcp.pop %v747
    %v749 = vmul.f32 %v747, %v748
    %v750 = vsub.f32 1.0, %v749
    %v751 = vmul.f32 %v748, %v750
    %v752 = vadd.f32 %v748, %v751
    %vm753 = vweird.f32 %v747
    %vm754 = vweird.f32 %v748
    %vm755 = vmor %vm753, %vm754
    %v756 = vsel %vm755, %v748, %v752
    %v757 = vand.u32 2147483647, %v747
    %vm758 = vcmp.eq.f32.partialorder %v757, 8.507059e+37
    %v759 = vand.u32 %v747, 2147483648
    %v760 = vor.u32 1.1754944e-38, %v759
    %v761 = vsel %vm758, %v760, %v756
    %v762 = vmul.f32 1.0, %v761
    %v763 = vxor.u32 %v743, 2147483648
    %v764 = vmul.f32 %v763, 1.442695
    %v765 = vpow.pop %v764
    %v766 = vadd.f32 %v765, 1.0
    %v767 = vrcp.pop %v766
    %v768 = vmul.f32 %v766, %v767
    %v769 = vsub.f32 1.0, %v768
    %v770 = vmul.f32 %v767, %v769
    %v771 = vadd.f32 %v767, %v770
    %vm772 = vweird.f32 %v766
    %vm773 = vweird.f32 %v767
    %vm774 = vmor %vm772, %vm773
    %v775 = vsel %vm774, %v767, %v771
    %v776 = vand.u32 2147483647, %v766
    %vm777 = vcmp.eq.f32.partialorder %v776, 8.507059e+37
    %v778 = vand.u32 %v766, 2147483648
    %v779 = vor.u32 1.1754944e-38, %v778
    %v780 = vsel %vm777, %v779, %v775
    %v781 = vmul.f32 1.0, %v780
    %v782 = vmul.f32 %v762, %v665
    %v783 = vtanh.pop %v716
    %785 = vrot.lane.b32.xlu0 %v783, 64
    %v786 = vpop.permute.xlu0 %785
    %v788 = vmul.f32 %v762, %v786
    %790 = vrot.lane.b32.xlu0 %v788, 32
    %v791 = vpop.permute.xlu0 %790
    %v793 = vadd.f32 %v782, %v791
    %v794 = vmul.f32 %v781, %v677
    %v795 = vtanh.pop %v743
    %797 = vrot.lane.b32.xlu0 %v795, 64
    %v798 = vpop.permute.xlu0 %797
    %v800 = vmul.f32 %v781, %v798
    %802 = vrot.lane.b32.xlu0 %v800, 32
    %v803 = vpop.permute.xlu0 %802
    %v805 = vadd.f32 %v794, %v803
    %v806 = vtanh.pop %v793
    %808 = vrot.lane.b32.xlu0 %v806, 64
    %v809 = vpop.permute.xlu0 %808
    %v811 = vmul.f32 %v762, %v809
    %v812 = vtanh.pop %v805
    %814 = vrot.lane.b32.xlu0 %v812, 64
    %v815 = vpop.permute.xlu0 %814
    %v817 = vmul.f32 %v781, %v815
    %v818 = vld [vmem:[%s126] sm:$0x3]
    %820 = vrot.lane.b32.xlu0 %v811, 32
    %v821 = vpop.permute.xlu0 %820
    %v822 = vsel %vm185, %v821, 0
    %824 = vmatpush.msra.mxu0 0.0
    %825 = vmatpush.msra.mxu0 0.0
    %826 = vmatpush.msra.mxu0 0.0
    %827 = vmatpush.msra.mxu0 0.0
    %828 = vmatpush.msra.mxu0 0.0
    %829 = vmatpush.msra.mxu0 0.0
    %830 = vmatpush.msra.mxu0 0.0
    %831 = vmatpush.msra.mxu0 0.0
    %832 = vmatpush.msra.mxu0 0.0
    %833 = vmatpush.msra.mxu0 0.0
    %834 = vmatpush.msra.mxu0 0.0
    %835 = vmatpush.msra.mxu0 0.0
    %836 = vmatpush.msra.mxu0 %v179
    %837 = vmatpush.msra.mxu0 %v178
    %838 = vmatpush.msra.mxu0 %v177
    %839 = vmatpush.msra.mxu0 %v176
    %840 = vmatmul.f32.gmra.mxu0 %v822
    %v841 = vpop.f32.mrf.mxu0
    %v842 = vadd.f32 0.0, %v841
    %843 = vdwg.mxu0
    %v844 = vadd.f32 %v818, %v842
    %v845 = vld [vmem:[%s130] sm:$0x3]
    %847 = vrot.lane.b32.xlu0 %v817, 32
    %v848 = vpop.permute.xlu0 %847
    %v849 = vsel %vm185, %v848, 0
    %851 = vmatpush.msra.mxu0 0.0
    %852 = vmatpush.msra.mxu0 0.0
    %853 = vmatpush.msra.mxu0 0.0
    %854 = vmatpush.msra.mxu0 0.0
    %855 = vmatpush.msra.mxu0 0.0
    %856 = vmatpush.msra.mxu0 0.0
    %857 = vmatpush.msra.mxu0 0.0
    %858 = vmatpush.msra.mxu0 0.0
    %859 = vmatpush.msra.mxu0 0.0
    %860 = vmatpush.msra.mxu0 0.0
    %861 = vmatpush.msra.mxu0 0.0
    %862 = vmatpush.msra.mxu0 0.0
    %863 = vmatpush.msra.mxu0 %v183
    %864 = vmatpush.msra.mxu0 %v182
    %865 = vmatpush.msra.mxu0 %v181
    %866 = vmatpush.msra.mxu0 %v180
    %867 = vmatmul.f32.gmra.mxu0 %v849
    %v868 = vpop.f32.mrf.mxu0
    %v869 = vadd.f32 0.0, %v868
    %870 = vdwg.mxu0
    %v871 = vadd.f32 %v845, %v869
    %v872 = vxor.u32 %v844, 2147483648
    %v873 = vmul.f32 %v872, 1.442695
    %v874 = vpow.pop %v873
    %v875 = vadd.f32 %v874, 1.0
    %v876 = vrcp.pop %v875
    %v877 = vmul.f32 %v875, %v876
    %v878 = vsub.f32 1.0, %v877
    %v879 = vmul.f32 %v876, %v878
    %v880 = vadd.f32 %v876, %v879
    %vm881 = vweird.f32 %v875
    %vm882 = vweird.f32 %v876
    %vm883 = vmor %vm881, %vm882
    %v884 = vsel %vm883, %v876, %v880
    %v885 = vand.u32 2147483647, %v875
    %vm886 = vcmp.eq.f32.partialorder %v885, 8.507059e+37
    %v887 = vand.u32 %v875, 2147483648
    %v888 = vor.u32 1.1754944e-38, %v887
    %v889 = vsel %vm886, %v888, %v884
    %v890 = vmul.f32 1.0, %v889
    %v891 = vxor.u32 %v871, 2147483648
    %v892 = vmul.f32 %v891, 1.442695
    %v893 = vpow.pop %v892
    %v894 = vadd.f32 %v893, 1.0
    %v895 = vrcp.pop %v894
    %v896 = vmul.f32 %v894, %v895
    %v897 = vsub.f32 1.0, %v896
    %v898 = vmul.f32 %v895, %v897
    %v899 = vadd.f32 %v895, %v898
    %vm900 = vweird.f32 %v894
    %vm901 = vweird.f32 %v895
    %vm902 = vmor %vm900, %vm901
    %v903 = vsel %vm902, %v895, %v899
    %v904 = vand.u32 2147483647, %v894
    %vm905 = vcmp.eq.f32.partialorder %v904, 8.507059e+37
    %v906 = vand.u32 %v894, 2147483648
    %v907 = vor.u32 1.1754944e-38, %v906
    %v908 = vsel %vm905, %v907, %v903
    %v909 = vmul.f32 1.0, %v908
    %v910 = vmul.f32 %v890, %v793
    %v911 = vtanh.pop %v844
    %913 = vrot.lane.b32.xlu0 %v911, 64
    %v914 = vpop.permute.xlu0 %913
    %v916 = vmul.f32 %v890, %v914
    %918 = vrot.lane.b32.xlu0 %v916, 32
    %v919 = vpop.permute.xlu0 %918
    %v921 = vadd.f32 %v910, %v919
    %v922 = vmul.f32 %v909, %v805
    %v923 = vtanh.pop %v871
    %925 = vrot.lane.b32.xlu0 %v923, 64
    %v926 = vpop.permute.xlu0 %925
    %v928 = vmul.f32 %v909, %v926
    %930 = vrot.lane.b32.xlu0 %v928, 32
    %v931 = vpop.permute.xlu0 %930
    %v933 = vadd.f32 %v922, %v931
    %v934 = vtanh.pop %v921
    %936 = vrot.lane.b32.xlu0 %v934, 64
    %v937 = vpop.permute.xlu0 %936
    %v939 = vmul.f32 %v890, %v937
    %v940 = vtanh.pop %v933
    %942 = vrot.lane.b32.xlu0 %v940, 64
    %v943 = vpop.permute.xlu0 %942
    %v945 = vmul.f32 %v909, %v943
    %v946 = vld [vmem:[%s144] sm:$0x3]
    %948 = vrot.lane.b32.xlu0 %v939, 32
    %v949 = vpop.permute.xlu0 %948
    %v950 = vsel %vm185, %v949, 0
    %952 = vmatpush.msra.mxu0 0.0
    %953 = vmatpush.msra.mxu0 0.0
    %954 = vmatpush.msra.mxu0 0.0
    %955 = vmatpush.msra.mxu0 0.0
    %956 = vmatpush.msra.mxu0 0.0
    %957 = vmatpush.msra.mxu0 0.0
    %958 = vmatpush.msra.mxu0 0.0
    %959 = vmatpush.msra.mxu0 0.0
    %960 = vmatpush.msra.mxu0 0.0
    %961 = vmatpush.msra.mxu0 0.0
    %962 = vmatpush.msra.mxu0 0.0
    %963 = vmatpush.msra.mxu0 0.0
    %964 = vmatpush.msra.mxu0 %v179
    %965 = vmatpush.msra.mxu0 %v178
    %966 = vmatpush.msra.mxu0 %v177
    %967 = vmatpush.msra.mxu0 %v176
    %968 = vmatmul.f32.gmra.mxu0 %v950
    %v969 = vpop.f32.mrf.mxu0
    %v970 = vadd.f32 0.0, %v969
    %971 = vdwg.mxu0
    %v972 = vadd.f32 %v946, %v970
    %v973 = vld [vmem:[%s148] sm:$0x3]
    %975 = vrot.lane.b32.xlu0 %v945, 32
    %v976 = vpop.permute.xlu0 %975
    %v977 = vsel %vm185, %v976, 0
    %979 = vmatpush.msra.mxu0 0.0
    %980 = vmatpush.msra.mxu0 0.0
    %981 = vmatpush.msra.mxu0 0.0
    %982 = vmatpush.msra.mxu0 0.0
    %983 = vmatpush.msra.mxu0 0.0
    %984 = vmatpush.msra.mxu0 0.0
    %985 = vmatpush.msra.mxu0 0.0
    %986 = vmatpush.msra.mxu0 0.0
    %987 = vmatpush.msra.mxu0 0.0
    %988 = vmatpush.msra.mxu0 0.0
    %989 = vmatpush.msra.mxu0 0.0
    %990 = vmatpush.msra.mxu0 0.0
    %991 = vmatpush.msra.mxu0 %v183
    %992 = vmatpush.msra.mxu0 %v182
    %993 = vmatpush.msra.mxu0 %v181
    %994 = vmatpush.msra.mxu0 %v180
    %995 = vmatmul.f32.gmra.mxu0 %v977
    %v996 = vpop.f32.mrf.mxu0
    %v997 = vadd.f32 0.0, %v996
    %998 = vdwg.mxu0
    %v999 = vadd.f32 %v973, %v997
    %v1000 = vxor.u32 %v972, 2147483648
    %v1001 = vmul.f32 %v1000, 1.442695
    %v1002 = vpow.pop %v1001
    %v1003 = vadd.f32 %v1002, 1.0
    %v1004 = vrcp.pop %v1003
    %v1005 = vmul.f32 %v1003, %v1004
    %v1006 = vsub.f32 1.0, %v1005
    %v1007 = vmul.f32 %v1004, %v1006
    %v1008 = vadd.f32 %v1004, %v1007
    %vm1009 = vweird.f32 %v1003
    %vm1010 = vweird.f32 %v1004
    %vm1011 = vmor %vm1009, %vm1010
    %v1012 = vsel %vm1011, %v1004, %v1008
    %v1013 = vand.u32 2147483647, %v1003
    %vm1014 = vcmp.eq.f32.partialorder %v1013, 8.507059e+37
    %v1015 = vand.u32 %v1003, 2147483648
    %v1016 = vor.u32 1.1754944e-38, %v1015
    %v1017 = vsel %vm1014, %v1016, %v1012
    %v1018 = vmul.f32 1.0, %v1017
    %v1019 = vxor.u32 %v999, 2147483648
    %v1020 = vmul.f32 %v1019, 1.442695
    %v1021 = vpow.pop %v1020
    %v1022 = vadd.f32 %v1021, 1.0
    %v1023 = vrcp.pop %v1022
    %v1024 = vmul.f32 %v1022, %v1023
    %v1025 = vsub.f32 1.0, %v1024
    %v1026 = vmul.f32 %v1023, %v1025
    %v1027 = vadd.f32 %v1023, %v1026
    %vm1028 = vweird.f32 %v1022
    %vm1029 = vweird.f32 %v1023
    %vm1030 = vmor %vm1028, %vm1029
    %v1031 = vsel %vm1030, %v1023, %v1027
    %v1032 = vand.u32 2147483647, %v1022
    %vm1033 = vcmp.eq.f32.partialorder %v1032, 8.507059e+37
    %v1034 = vand.u32 %v1022, 2147483648
    %v1035 = vor.u32 1.1754944e-38, %v1034
    %v1036 = vsel %vm1033, %v1035, %v1031
    %v1037 = vmul.f32 1.0, %v1036
    %v1038 = vmul.f32 %v1018, %v921
    %v1039 = vtanh.pop %v972
    %1041 = vrot.lane.b32.xlu0 %v1039, 64
    %v1042 = vpop.permute.xlu0 %1041
    %v1044 = vmul.f32 %v1018, %v1042
    %1046 = vrot.lane.b32.xlu0 %v1044, 32
    %v1047 = vpop.permute.xlu0 %1046
    %v1049 = vadd.f32 %v1038, %v1047
    %v1050 = vmul.f32 %v1037, %v933
    %v1051 = vtanh.pop %v999
    %1053 = vrot.lane.b32.xlu0 %v1051, 64
    %v1054 = vpop.permute.xlu0 %1053
    %v1056 = vmul.f32 %v1037, %v1054
    %1058 = vrot.lane.b32.xlu0 %v1056, 32
    %v1059 = vpop.permute.xlu0 %1058
    %v1061 = vadd.f32 %v1050, %v1059
    %v1062 = vtanh.pop %v1049
    %1064 = vrot.lane.b32.xlu0 %v1062, 64
    %v1065 = vpop.permute.xlu0 %1064
    %v1067 = vmul.f32 %v1018, %v1065
    %v1068 = vtanh.pop %v1061
    %1070 = vrot.lane.b32.xlu0 %v1068, 64
    %v1071 = vpop.permute.xlu0 %1070
    %v1073 = vmul.f32 %v1037, %v1071
    %v1074 = vld [vmem:[%s162] sm:$0x3]
    %1076 = vrot.lane.b32.xlu0 %v1067, 32
    %v1077 = vpop.permute.xlu0 %1076
    %v1078 = vsel %vm185, %v1077, 0
    %1080 = vmatpush.msra.mxu0 0.0
    %1081 = vmatpush.msra.mxu0 0.0
    %1082 = vmatpush.msra.mxu0 0.0
    %1083 = vmatpush.msra.mxu0 0.0
    %1084 = vmatpush.msra.mxu0 0.0
    %1085 = vmatpush.msra.mxu0 0.0
    %1086 = vmatpush.msra.mxu0 0.0
    %1087 = vmatpush.msra.mxu0 0.0
    %1088 = vmatpush.msra.mxu0 0.0
    %1089 = vmatpush.msra.mxu0 0.0
    %1090 = vmatpush.msra.mxu0 0.0
    %1091 = vmatpush.msra.mxu0 0.0
    %1092 = vmatpush.msra.mxu0 %v179
    %1093 = vmatpush.msra.mxu0 %v178
    %1094 = vmatpush.msra.mxu0 %v177
    %1095 = vmatpush.msra.mxu0 %v176
    %1096 = vmatmul.f32.gmra.mxu0 %v1078
    %v1097 = vpop.f32.mrf.mxu0
    %v1098 = vadd.f32 0.0, %v1097
    %1099 = vdwg.mxu0
    %v1100 = vadd.f32 %v1074, %v1098
    %v1101 = vld [vmem:[%s166] sm:$0x3]
    %1103 = vrot.lane.b32.xlu0 %v1073, 32
    %v1104 = vpop.permute.xlu0 %1103
    %v1105 = vsel %vm185, %v1104, 0
    %1107 = vmatpush.msra.mxu0 0.0
    %1108 = vmatpush.msra.mxu0 0.0
    %1109 = vmatpush.msra.mxu0 0.0
    %1110 = vmatpush.msra.mxu0 0.0
    %1111 = vmatpush.msra.mxu0 0.0
    %1112 = vmatpush.msra.mxu0 0.0
    %1113 = vmatpush.msra.mxu0 0.0
    %1114 = vmatpush.msra.mxu0 0.0
    %1115 = vmatpush.msra.mxu0 0.0
    %1116 = vmatpush.msra.mxu0 0.0
    %1117 = vmatpush.msra.mxu0 0.0
    %1118 = vmatpush.msra.mxu0 0.0
    %1119 = vmatpush.msra.mxu0 %v183
    %1120 = vmatpush.msra.mxu0 %v182
    %1121 = vmatpush.msra.mxu0 %v181
    %1122 = vmatpush.msra.mxu0 %v180
    %1123 = vmatmul.f32.gmra.mxu0 %v1105
    %v1124 = vpop.f32.mrf.mxu0
    %v1125 = vadd.f32 0.0, %v1124
    %1126 = vdwg.mxu0
    %v1127 = vadd.f32 %v1101, %v1125
    %v1128 = vxor.u32 %v1100, 2147483648
    %v1129 = vmul.f32 %v1128, 1.442695
    %v1130 = vpow.pop %v1129
    %v1131 = vadd.f32 %v1130, 1.0
    %v1132 = vrcp.pop %v1131
    %v1133 = vmul.f32 %v1131, %v1132
    %v1134 = vsub.f32 1.0, %v1133
    %v1135 = vmul.f32 %v1132, %v1134
    %v1136 = vadd.f32 %v1132, %v1135
    %vm1137 = vweird.f32 %v1131
    %vm1138 = vweird.f32 %v1132
    %vm1139 = vmor %vm1137, %vm1138
    %v1140 = vsel %vm1139, %v1132, %v1136
    %v1141 = vand.u32 2147483647, %v1131
    %vm1142 = vcmp.eq.f32.partialorder %v1141, 8.507059e+37
    %v1143 = vand.u32 %v1131, 2147483648
    %v1144 = vor.u32 1.1754944e-38, %v1143
    %v1145 = vsel %vm1142, %v1144, %v1140
    %v1146 = vmul.f32 1.0, %v1145
    %v1147 = vxor.u32 %v1127, 2147483648
    %v1148 = vmul.f32 %v1147, 1.442695
    %v1149 = vpow.pop %v1148
    %v1150 = vadd.f32 %v1149, 1.0
    %v1151 = vrcp.pop %v1150
    %v1152 = vmul.f32 %v1150, %v1151
    %v1153 = vsub.f32 1.0, %v1152
    %v1154 = vmul.f32 %v1151, %v1153
    %v1155 = vadd.f32 %v1151, %v1154
    %vm1156 = vweird.f32 %v1150
    %vm1157 = vweird.f32 %v1151
    %vm1158 = vmor %vm1156, %vm1157
    %v1159 = vsel %vm1158, %v1151, %v1155
    %v1160 = vand.u32 2147483647, %v1150
    %vm1161 = vcmp.eq.f32.partialorder %v1160, 8.507059e+37
    %v1162 = vand.u32 %v1150, 2147483648
    %v1163 = vor.u32 1.1754944e-38, %v1162
    %v1164 = vsel %vm1161, %v1163, %v1159
    %v1165 = vmul.f32 1.0, %v1164
    %v1166 = vmul.f32 %v1146, %v1049
    %v1167 = vtanh.pop %v1100
    %1169 = vrot.lane.b32.xlu0 %v1167, 64
    %v1170 = vpop.permute.xlu0 %1169
    %v1172 = vmul.f32 %v1146, %v1170
    %1174 = vrot.lane.b32.xlu0 %v1172, 32
    %v1175 = vpop.permute.xlu0 %1174
    %v1177 = vadd.f32 %v1166, %v1175
    %v1178 = vmul.f32 %v1165, %v1061
    %v1179 = vtanh.pop %v1127
    %1181 = vrot.lane.b32.xlu0 %v1179, 64
    %v1182 = vpop.permute.xlu0 %1181
    %v1184 = vmul.f32 %v1165, %v1182
    %1186 = vrot.lane.b32.xlu0 %v1184, 32
    %v1187 = vpop.permute.xlu0 %1186
    %v1189 = vadd.f32 %v1178, %v1187
    %v1190 = vtanh.pop %v1177
    %1192 = vrot.lane.b32.xlu0 %v1190, 64
    %v1193 = vpop.permute.xlu0 %1192
    %v1195 = vmul.f32 %v1146, %v1193
    %v1196 = vtanh.pop %v1189
    %1198 = vrot.lane.b32.xlu0 %v1196, 64
    %v1199 = vpop.permute.xlu0 %1198
    %v1201 = vmul.f32 %v1165, %v1199
    %1203 = vrot.lane.b32.xlu0 %v1195, 32
    %v1204 = vpop.permute.xlu0 %1203
    %vm1206 = vcmask 254976
    %1207 = vst.msk [vmem:[#allocation7] sm:$0x3] %vm1206, %v1204
    %1209 = vrot.lane.b32.xlu0 %v1201, 64
    %v1210 = vpop.permute.xlu0 %1209
    %vm1212 = vcmask 517376
    %1213 = vst.msk [vmem:[#allocation7] sm:$0x3] %vm1212, %v1210
    // Predicated region
    $region26: #{char_bilstm_forward.1} parent=1 // pred_check
      _
    $region27: #{char_bilstm_forward.1} parent=1 // pred_check_branch
      %1215 = sbr.rel (0) target = $region29
    $region28: #{char_bilstm_forward.1} parent=1 // pred_region
      %1217 = vsyncadd [#allocation5], 0
      %s1219 = sshll.u32 [#allocation7], 4
      %s1220 = int_to_ptr.vmem [resolvable:$true] %s1219
      %s1221 = sshll.u32 %s5, 4
      %s1222 = int_to_ptr.hbm [resolvable:$true] %s1221
      %1224 = dma.vmem_to_hbm [thread:$0]  %s1220, 32, %s1222, [#allocation5]
    $region29: #{char_bilstm_forward.1} parent=1 // pred_fallthru
      _
    // Predicated region
    $region30: #{char_bilstm_forward.1} parent=1 // pred_check
      _
    $region31: #{char_bilstm_forward.1} parent=1 // pred_check_branch
      %1226 = sbr.rel (0) target = $region33
    $region32: #{char_bilstm_forward.1} parent=1 // pred_region
      %1228 = dma.done [#allocation5], 32
    $region33: #{char_bilstm_forward.1} parent=1 // pred_fallthru
      _
    %1229 = vsyncpa [#allocation5], 1
    %1230 = vsyncpa [#allocation6], 1

</llo_original>
